<compile_context>
chip_gen: v7x
topology: tpu7x:2x2x1
jax: 0.10.0
libtpu: 0.0.40
codegen_flags: <defaults>
</compile_context>

<pallas_src>
import jax
import jax.numpy as jnp
import numpy as np
from jax.experimental import pallas as pl
from jax.experimental.pallas import tpu as pltpu  # noqa: F401

# MXU operand dtype.  bf16 cuts per-matmul MXU passes on every chip generation;
# all gate/cell elementwise math stays float32.
MATMUL_DTYPE = jnp.bfloat16


def _round_up(n, m):
    return ((n + m - 1) // m) * m


# ----------------------------------------------------------------------------
# Fused forward kernel factory (wavefronted LSTM stack + head, one launch)
# ----------------------------------------------------------------------------
def _make_fused_kernel(num_layers, seq_len, batch_pad, hidden_dim, matmul_dtype):
    L, T, Bp, H = num_layers, seq_len, batch_pad, hidden_dim
    LH = L * H                      # fused state width
    W = T + L - 1                   # wavefront steps

    def kernel(xflat_ref, wih0_ref, biasg_ref, whhb_ref, uemb_ref,
               w1t_ref, b1_ref, w2at_ref, w2bt_ref, b2_ref,
               sembt_ref, scores_ref):

        def mm(lhs, rhs):
            return jnp.dot(lhs.astype(matmul_dtype), rhs,
                           preferred_element_type=jnp.float32)

        # Layer-0 input projection for ALL wavefront steps, hoisted out of the
        # serial recurrence.  Columns are in the fused gate-major layout
        # [i_0..i_{L-1} | f_* | g_* | o_*]; layer>0 columns only carry bias here
        # (their inputs arrive via the recurrent block-diag matmul below).
        gx = mm(xflat_ref[...], wih0_ref[...]) + biasg_ref[...]   # (W*Bp, 4*LH)

        whh_big = whhb_ref[...]                                   # (LH, 4*LH)
        lane = jax.lax.broadcasted_iota(jnp.int32, (Bp, LH), 1)   # hoisted iota

        hcat = jnp.zeros((Bp, LH), jnp.float32)    # [h_layer0 | h_layer1 | ...]
        ccat = jnp.zeros((Bp, LH), jnp.float32)

        # Wavefront recurrence: at step w, layer l advances its time index w-l.
        # All layers share ONE block-diagonal MXU matmul and ONE sigmoid per
        # step, so the L recurrent chains overlap in the unrolled schedule.
        for w in range(W):                          # fully unrolled
            gates = gx[w * Bp:(w + 1) * Bp, :]
            if w > 0:                               # t=0: h==0 -> skip matmul
                gates = gates + mm(hcat, whh_big)
            sig = jax.nn.sigmoid(gates)             # only sigmoid on the chain
            icat = sig[:, 0 * LH:1 * LH]
            fcat = sig[:, 1 * LH:2 * LH]
            gcat = 2.0 * sig[:, 2 * LH:3 * LH] - 1.0   # tanh(x)=2*sigmoid(2x)-1
            ocat = sig[:, 3 * LH:4 * LH]
            ccat = fcat * ccat + icat * gcat
            if w < L - 1:                           # layers not started stay 0
                ccat = jnp.where(lane < (w + 1) * H, ccat, 0.0)
            hcat = ocat * jnp.tanh(ccat)

        h_last = hcat[:, (L - 1) * H:L * H]         # top layer, final timestep

        # ---- head: relu(linear1(h)); concat+linear2 realized as split linear
        h1 = jnp.maximum(mm(h_last, w1t_ref[...]) + b1_ref[...], 0.0)   # (Bp, E)
        vec = (mm(h1, w2at_ref[...]) + mm(uemb_ref[...], w2bt_ref[...])
               + b2_ref[...])                                           # (Bp, E)
        # TODO(synk): nn.Dropout(0.4) treated as inference-mode identity.

        # ---- sample scoring: ONE dense MXU matmul against every (b, s) sample
        # embedding, then block-diagonal extraction (row b keeps its own
        # Sp-lane block).  Avoids Bp serial M=1 MXU dispatches; output is a
        # lane-dense (Bp, Sp=128) slab.
        Sp = scores_ref.shape[-1]
        all_sc = mm(vec, sembt_ref[...])            # (Bp, Bp*Sp)
        row = jax.lax.broadcasted_iota(jnp.int32, (Bp, Sp), 0)
        scores = jnp.zeros((Bp, Sp), jnp.float32)
        for b in range(Bp):
            scores = scores + jnp.where(
                row == b, all_sc[:, b * Sp:(b + 1) * Sp], 0.0)
        scores_ref[...] = scores

    return kernel


# ----------------------------------------------------------------------------
# One-time parameter packing (hoisted out of the per-call path)
# ----------------------------------------------------------------------------
def pack_params(params, matmul_dtype=MATMUL_DTYPE):
    lstm = params["lstm"]
    L = len(lstm)
    H = int(np.asarray(lstm[0]["w_hh"]).shape[1])
    E = int(np.asarray(params["embed"]).shape[1])
    LH, G = L * H, 4 * L * H
    gscale = (1.0, 1.0, 2.0, 1.0)       # pre-scale g gate by 2 (tanh->sigmoid)

    wih0 = np.zeros((E, G), np.float32)     # layer-0 input weights in fused cols
    biasg = np.zeros((1, G), np.float32)    # fused (b_ih + b_hh) per layer/gate
    whhb = np.zeros((LH, G), np.float32)    # block matrix: Whh_l + Wih_{l+1}
    for l, lw in enumerate(lstm):
        w_ih = np.asarray(lw["w_ih"], np.float32)        # (4H, in)
        w_hh = np.asarray(lw["w_hh"], np.float32)        # (4H, H)
        bias = (np.asarray(lw["b_ih"], np.float32)
                + np.asarray(lw["b_hh"], np.float32))    # (4H,)
        for q in range(4):                               # i, f, g, o
            sc = gscale[q]
            cs = slice(q * LH + l * H, q * LH + (l + 1) * H)
            biasg[0, cs] = sc * bias[q * H:(q + 1) * H]
            # recurrent weight of layer l feeds layer-l gate columns
            whhb[l * H:(l + 1) * H, cs] = sc * w_hh[q * H:(q + 1) * H, :].T
            if l == 0:
                wih0[:, cs] = sc * w_ih[q * H:(q + 1) * H, :].T
            else:
                # input weight of layer l (>0) is fed by layer l-1's hidden rows
                whhb[(l - 1) * H:l * H, cs] = sc * w_ih[q * H:(q + 1) * H, :].T

    embed = np.asarray(params["embed"], np.float32)
    w2 = np.asarray(params["w2"], np.float32)
    return {
        "wih0": jnp.asarray(wih0, matmul_dtype),
        "biasg": jnp.asarray(biasg, jnp.float32),
        "whhb": jnp.asarray(whhb, matmul_dtype),
        "embed": jnp.asarray(embed, jnp.float32),         # gathered for x
        "embed_t_md": jnp.asarray(embed.T, matmul_dtype),  # gathered for samples
        "embed_user": jnp.asarray(params["embed_user"], jnp.float32),
        "w1t": jnp.asarray(np.asarray(params["w1"], np.float32).T, matmul_dtype),
        "b1": jnp.asarray(np.asarray(params["b1"], np.float32).reshape(1, -1),
                          jnp.float32),
        "w2at": jnp.asarray(w2[:, :E].T, matmul_dtype),
        "w2bt": jnp.asarray(w2[:, E:].T, matmul_dtype),
        "b2": jnp.asarray(np.asarray(params["b2"], np.float32).reshape(1, -1),
                          jnp.float32),
    }


# ----------------------------------------------------------------------------
# Full forward (single Pallas launch; gathers / padding remain thin jit glue)
# ----------------------------------------------------------------------------
def forward_pallas(packed, x, user, sample_pos, sample_neg):
    B, T = x.shape
    E = packed["wih0"].shape[0]
    LH = packed["whhb"].shape[0]
    H = packed["w1t"].shape[0]
    L = LH // H

    Bp = _round_up(B, 8)                              # sublane-dense batch
    S = sample_pos.shape[1] + sample_neg.shape[1]     # 63
    Sp = _round_up(S, 128)                            # lane-dense score stores
    W = T + L - 1                                     # wavefront steps

    # ---- per-call glue: gathers / padding / time-major flatten --------------
    xp = jnp.pad(x, ((0, Bp - B), (0, 0)))
    emb = jnp.take(packed["embed"], xp, axis=0)               # (Bp, T, E)
    xflat = jnp.swapaxes(emb, 0, 1)                           # (T, Bp, E)
    xflat = jnp.pad(xflat, ((0, W - T), (0, 0), (0, 0)))      # zero tail step(s)
    xflat = xflat.reshape(W * Bp, E)

    up = jnp.pad(user, ((0, Bp - B),))
    uemb = jnp.take(packed["embed_user"], up, axis=0)          # (Bp, U)

    sample = jnp.concatenate([sample_pos, sample_neg], axis=1)
    sample = jnp.pad(sample, ((0, Bp - B), (0, Sp - S)))       # (Bp, Sp)
    sembt = jnp.take(packed["embed_t_md"], sample.reshape(-1), axis=1)  # (E, Bp*Sp)

    kernel = _make_fused_kernel(L, T, Bp, H, MATMUL_DTYPE)
    scores = pl.pallas_call(
        kernel,
        out_shape=jax.ShapeDtypeStruct((Bp, Sp), jnp.float32),
    )(xflat, packed["wih0"], packed["biasg"], packed["whhb"], uemb,
      packed["w1t"], packed["b1"], packed["w2at"], packed["w2bt"],
      packed["b2"], sembt)
    return scores[:B, :S]


# ----------------------------------------------------------------------------
# Pure-JAX reference for validation
# ----------------------------------------------------------------------------
def forward_ref(params, x, user, sample_pos, sample_neg):
    emb = jnp.take(params["embed"], x, axis=0)             # (B, T, E)
    B = emb.shape[0]
    seq = emb
    h_last = None
    for lw in params["lstm"]:
        H = lw["w_hh"].shape[1]

        def step(carry, x_t, lw=lw, H=H):
            h, c = carry
            gates = (x_t @ lw["w_ih"].T + lw["b_ih"]
                     + h @ lw["w_hh"].T + lw["b_hh"])
            i = jax.nn.sigmoid(gates[:, :H])
            f = jax.nn.sigmoid(gates[:, H:2 * H])
            g = jnp.tanh(gates[:, 2 * H:3 * H])
            o = jax.nn.sigmoid(gates[:, 3 * H:])
            c = f * c + i * g
            h = o * jnp.tanh(c)
            return (h, c), h

        init = (jnp.zeros((B, H), jnp.float32), jnp.zeros((B, H), jnp.float32))
        (h_last, _), hs = jax.lax.scan(step, init, jnp.swapaxes(seq, 0, 1))
        seq = jnp.swapaxes(hs, 0, 1)

    h1 = jnp.maximum(h_last @ params["w1"].T + params["b1"], 0.0)
    user_emb = jnp.take(params["embed_user"], user, axis=0)
    cat = jnp.concatenate([h1, user_emb], axis=1)
    vec = cat @ params["w2"].T + params["b2"]
    sample = jnp.concatenate([sample_pos, sample_neg], axis=1)
    sample_emb = jnp.take(params["embed"], sample, axis=0)
    scores = jnp.einsum("be,bse->bs", vec, sample_emb)
    return scores


# ----------------------------------------------------------------------------
# Deterministic parameter init + example run
# ----------------------------------------------------------------------------
def init_params(key, item_size, user_size, embed_dim, hidden_dim, num_lstm,
                embed_user_dim):
    keys = jax.random.split(key, 4 + 4 * num_lstm + 4)
    ki = iter(keys)

    def nrm(k, shape, scale=0.1):
        return scale * jax.random.normal(k, shape, dtype=jnp.float32)

    params = {
        "embed": nrm(next(ki), (item_size, embed_dim)),
        "embed_user": nrm(next(ki), (user_size, embed_user_dim)),
        "embed_item": nrm(next(ki), (item_size, embed_dim)),   # unused in forward
        "lstm": [],
    }
    in_dim = embed_dim
    for _ in range(num_lstm):
        params["lstm"].append({
            "w_ih": nrm(next(ki), (4 * hidden_dim, in_dim)),
            "w_hh": nrm(next(ki), (4 * hidden_dim, hidden_dim)),
            "b_ih": nrm(next(ki), (4 * hidden_dim,)),
            "b_hh": nrm(next(ki), (4 * hidden_dim,)),
        })
        in_dim = hidden_dim
    params["w1"] = nrm(next(ki), (embed_dim, hidden_dim))
    params["b1"] = nrm(next(ki), (embed_dim,))
    params["w2"] = nrm(next(ki), (embed_dim, embed_dim + embed_user_dim))
    params["b2"] = nrm(next(ki), (embed_dim,))
    return params


if __name__ == "__main__":
    item_size, user_size = 100, 20
    embed_dim, hidden_dim = 32, 32
    num_lstm, embed_user_dim = 2, 16
    B, T = 2, 8

    key = jax.random.PRNGKey(0)
    kp, kx, ku, kpos, kneg = jax.random.split(key, 5)

    params = init_params(kp, item_size, user_size, embed_dim, hidden_dim,
                         num_lstm, embed_user_dim)

    x = jax.random.randint(kx, (B, T), 0, item_size, dtype=jnp.int32)
    user = jax.random.randint(ku, (B,), 0, user_size, dtype=jnp.int32)
    sample_pos = jax.random.randint(kpos, (B, 3), 0, item_size, dtype=jnp.int32)
    sample_neg = jax.random.randint(kneg, (B, 60), 0, item_size, dtype=jnp.int32)

    packed = pack_params(params)                 # one-time (hoisted) weight prep
    fwd = jax.jit(forward_pallas)

    scores = jax.block_until_ready(fwd(packed, x, user, sample_pos, sample_neg))
    assert scores.shape == (B, 63), scores.shape

    ref = jax.block_until_ready(forward_ref(params, x, user, sample_pos, sample_neg))
    # bf16 MXU operands -> relaxed tolerance (reference is pure f32).
    np.testing.assert_allclose(np.asarray(scores), np.asarray(ref),
                               rtol=1e-2, atol=1e-2)

    print("KERNEL_OK")
</pallas_src>

<mosaic_0001>
module attributes {stable_mosaic.version = 11 : i64} {
  func.func @kernel(%arg0: memref<72x32xf32, #tpu.memory_space<vmem>>, %arg1: memref<32x256xbf16, #tpu.memory_space<vmem>>, %arg2: memref<1x256xf32, #tpu.memory_space<vmem>>, %arg3: memref<64x256xbf16, #tpu.memory_space<vmem>>, %arg4: memref<8x16xf32, #tpu.memory_space<vmem>>, %arg5: memref<32x32xbf16, #tpu.memory_space<vmem>>, %arg6: memref<1x32xf32, #tpu.memory_space<vmem>>, %arg7: memref<32x32xbf16, #tpu.memory_space<vmem>>, %arg8: memref<16x32xbf16, #tpu.memory_space<vmem>>, %arg9: memref<1x32xf32, #tpu.memory_space<vmem>>, %arg10: memref<32x1024xbf16, #tpu.memory_space<vmem>>, %arg11: memref<8x128xf32, #tpu.memory_space<vmem>>) attributes {dimension_semantics = [], scalar_prefetch = 0 : i64, scratch_operands = 0 : i64, tpu.core_type = #tpu.core_type<tc>} {
    %c0 = arith.constant 0 : index
    %c0_0 = arith.constant 0 : index
    %0 = vector.load %arg0[%c0, %c0_0] : memref<72x32xf32, #tpu.memory_space<vmem>>, vector<72x32xf32>
    %c0_1 = arith.constant 0 : index
    %c0_2 = arith.constant 0 : index
    %1 = vector.load %arg1[%c0_1, %c0_2] : memref<32x256xbf16, #tpu.memory_space<vmem>>, vector<32x256xbf16>
    %2 = arith.truncf %0 : vector<72x32xf32> to vector<72x32xbf16>
    %cst = arith.constant dense<0.000000e+00> : vector<72x256xf32>
    %3 = tpu.matmul %2, %1, %cst {dimension_numbers = #tpu.dot_dimension_numbers<[1], [0], [0], [1], [0, 0, 1, 1], [], []>} : vector<72x32xbf16>, vector<32x256xbf16>, vector<72x256xf32> -> vector<72x256xf32>
    %c0_3 = arith.constant 0 : index
    %c0_4 = arith.constant 0 : index
    %4 = vector.load %arg2[%c0_3, %c0_4] : memref<1x256xf32, #tpu.memory_space<vmem>>, vector<1x256xf32>
    %5 = vector.broadcast %4 : vector<1x256xf32> to vector<72x256xf32>
    %6 = arith.addf %3, %5 : vector<72x256xf32>
    %c0_5 = arith.constant 0 : index
    %c0_6 = arith.constant 0 : index
    %7 = vector.load %arg3[%c0_5, %c0_6] : memref<64x256xbf16, #tpu.memory_space<vmem>>, vector<64x256xbf16>
    %8 = tpu.iota {dimensions = array<i32: 1>} : vector<8x64xi32>
    %cst_7 = arith.constant 0.000000e+00 : f32
    %9 = vector.broadcast %cst_7 : f32 to vector<8x64xf32>
    %10 = vector.extract_strided_slice %6 {offsets = [0, 0], sizes = [8, 256], strides = [1, 1]} : vector<72x256xf32> to vector<8x256xf32>
    %11 = arith.negf %10 : vector<8x256xf32>
    %12 = math.exp %11 : vector<8x256xf32>
    %cst_8 = arith.constant 1.000000e+00 : f32
    %13 = vector.broadcast %cst_8 : f32 to vector<8x256xf32>
    %14 = arith.addf %13, %12 : vector<8x256xf32>
    %15 = arith.divf %13, %14 : vector<8x256xf32>
    %16 = vector.extract_strided_slice %15 {offsets = [0, 0], sizes = [8, 64], strides = [1, 1]} : vector<8x256xf32> to vector<8x64xf32>
    %17 = vector.extract_strided_slice %15 {offsets = [0, 64], sizes = [8, 64], strides = [1, 1]} : vector<8x256xf32> to vector<8x64xf32>
    %18 = vector.extract_strided_slice %15 {offsets = [0, 128], sizes = [8, 64], strides = [1, 1]} : vector<8x256xf32> to vector<8x64xf32>
    %cst_9 = arith.constant 2.000000e+00 : f32
    %19 = vector.broadcast %cst_9 : f32 to vector<8x64xf32>
    %20 = arith.mulf %19, %18 : vector<8x64xf32>
    %cst_10 = arith.constant 1.000000e+00 : f32
    %21 = vector.broadcast %cst_10 : f32 to vector<8x64xf32>
    %22 = arith.subf %20, %21 : vector<8x64xf32>
    %23 = vector.extract_strided_slice %15 {offsets = [0, 192], sizes = [8, 64], strides = [1, 1]} : vector<8x256xf32> to vector<8x64xf32>
    %24 = arith.mulf %17, %9 : vector<8x64xf32>
    %25 = arith.mulf %16, %22 : vector<8x64xf32>
    %26 = arith.addf %24, %25 : vector<8x64xf32>
    %c32_i32 = arith.constant 32 : i32
    %27 = vector.broadcast %c32_i32 : i32 to vector<8x64xi32>
    %28 = arith.cmpi slt, %8, %27 : vector<8x64xi32>
    %cst_11 = arith.constant 0.000000e+00 : f32
    %29 = vector.broadcast %cst_11 : f32 to vector<8x64xf32>
    %30 = arith.select %28, %26, %29 : vector<8x64xi1>, vector<8x64xf32>
    %31 = math.tanh %30 : vector<8x64xf32>
    %32 = arith.mulf %23, %31 : vector<8x64xf32>
    %33 = vector.extract_strided_slice %6 {offsets = [8, 0], sizes = [8, 256], strides = [1, 1]} : vector<72x256xf32> to vector<8x256xf32>
    %34 = arith.truncf %32 : vector<8x64xf32> to vector<8x64xbf16>
    %cst_12 = arith.constant dense<0.000000e+00> : vector<8x256xf32>
    %35 = tpu.matmul %34, %7, %cst_12 {dimension_numbers = #tpu.dot_dimension_numbers<[1], [0], [0], [1], [0, 0, 1, 1], [], []>} : vector<8x64xbf16>, vector<64x256xbf16>, vector<8x256xf32> -> vector<8x256xf32>
    %36 = arith.addf %33, %35 : vector<8x256xf32>
    %37 = arith.negf %36 : vector<8x256xf32>
    %38 = math.exp %37 : vector<8x256xf32>
    %cst_13 = arith.constant 1.000000e+00 : f32
    %39 = vector.broadcast %cst_13 : f32 to vector<8x256xf32>
    %40 = arith.addf %39, %38 : vector<8x256xf32>
    %41 = arith.divf %39, %40 : vector<8x256xf32>
    %42 = vector.extract_strided_slice %41 {offsets = [0, 0], sizes = [8, 64], strides = [1, 1]} : vector<8x256xf32> to vector<8x64xf32>
    %43 = vector.extract_strided_slice %41 {offsets = [0, 64], sizes = [8, 64], strides = [1, 1]} : vector<8x256xf32> to vector<8x64xf32>
    %44 = vector.extract_strided_slice %41 {offsets = [0, 128], sizes = [8, 64], strides = [1, 1]} : vector<8x256xf32> to vector<8x64xf32>
    %cst_14 = arith.constant 2.000000e+00 : f32
    %45 = vector.broadcast %cst_14 : f32 to vector<8x64xf32>
    %46 = arith.mulf %45, %44 : vector<8x64xf32>
    %cst_15 = arith.constant 1.000000e+00 : f32
    %47 = vector.broadcast %cst_15 : f32 to vector<8x64xf32>
    %48 = arith.subf %46, %47 : vector<8x64xf32>
    %49 = vector.extract_strided_slice %41 {offsets = [0, 192], sizes = [8, 64], strides = [1, 1]} : vector<8x256xf32> to vector<8x64xf32>
    %50 = arith.mulf %43, %30 : vector<8x64xf32>
    %51 = arith.mulf %42, %48 : vector<8x64xf32>
    %52 = arith.addf %50, %51 : vector<8x64xf32>
    %53 = math.tanh %52 : vector<8x64xf32>
    %54 = arith.mulf %49, %53 : vector<8x64xf32>
    %55 = vector.extract_strided_slice %6 {offsets = [16, 0], sizes = [8, 256], strides = [1, 1]} : vector<72x256xf32> to vector<8x256xf32>
    %56 = arith.truncf %54 : vector<8x64xf32> to vector<8x64xbf16>
    %cst_16 = arith.constant dense<0.000000e+00> : vector<8x256xf32>
    %57 = tpu.matmul %56, %7, %cst_16 {dimension_numbers = #tpu.dot_dimension_numbers<[1], [0], [0], [1], [0, 0, 1, 1], [], []>} : vector<8x64xbf16>, vector<64x256xbf16>, vector<8x256xf32> -> vector<8x256xf32>
    %58 = arith.addf %55, %57 : vector<8x256xf32>
    %59 = arith.negf %58 : vector<8x256xf32>
    %60 = math.exp %59 : vector<8x256xf32>
    %cst_17 = arith.constant 1.000000e+00 : f32
    %61 = vector.broadcast %cst_17 : f32 to vector<8x256xf32>
    %62 = arith.addf %61, %60 : vector<8x256xf32>
    %63 = arith.divf %61, %62 : vector<8x256xf32>
    %64 = vector.extract_strided_slice %63 {offsets = [0, 0], sizes = [8, 64], strides = [1, 1]} : vector<8x256xf32> to vector<8x64xf32>
    %65 = vector.extract_strided_slice %63 {offsets = [0, 64], sizes = [8, 64], strides = [1, 1]} : vector<8x256xf32> to vector<8x64xf32>
    %66 = vector.extract_strided_slice %63 {offsets = [0, 128], sizes = [8, 64], strides = [1, 1]} : vector<8x256xf32> to vector<8x64xf32>
    %cst_18 = arith.constant 2.000000e+00 : f32
    %67 = vector.broadcast %cst_18 : f32 to vector<8x64xf32>
    %68 = arith.mulf %67, %66 : vector<8x64xf32>
    %cst_19 = arith.constant 1.000000e+00 : f32
    %69 = vector.broadcast %cst_19 : f32 to vector<8x64xf32>
    %70 = arith.subf %68, %69 : vector<8x64xf32>
    %71 = vector.extract_strided_slice %63 {offsets = [0, 192], sizes = [8, 64], strides = [1, 1]} : vector<8x256xf32> to vector<8x64xf32>
    %72 = arith.mulf %65, %52 : vector<8x64xf32>
    %73 = arith.mulf %64, %70 : vector<8x64xf32>
    %74 = arith.addf %72, %73 : vector<8x64xf32>
    %75 = math.tanh %74 : vector<8x64xf32>
    %76 = arith.mulf %71, %75 : vector<8x64xf32>
    %77 = vector.extract_strided_slice %6 {offsets = [24, 0], sizes = [8, 256], strides = [1, 1]} : vector<72x256xf32> to vector<8x256xf32>
    %78 = arith.truncf %76 : vector<8x64xf32> to vector<8x64xbf16>
    %cst_20 = arith.constant dense<0.000000e+00> : vector<8x256xf32>
    %79 = tpu.matmul %78, %7, %cst_20 {dimension_numbers = #tpu.dot_dimension_numbers<[1], [0], [0], [1], [0, 0, 1, 1], [], []>} : vector<8x64xbf16>, vector<64x256xbf16>, vector<8x256xf32> -> vector<8x256xf32>
    %80 = arith.addf %77, %79 : vector<8x256xf32>
    %81 = arith.negf %80 : vector<8x256xf32>
    %82 = math.exp %81 : vector<8x256xf32>
    %cst_21 = arith.constant 1.000000e+00 : f32
    %83 = vector.broadcast %cst_21 : f32 to vector<8x256xf32>
    %84 = arith.addf %83, %82 : vector<8x256xf32>
    %85 = arith.divf %83, %84 : vector<8x256xf32>
    %86 = vector.extract_strided_slice %85 {offsets = [0, 0], sizes = [8, 64], strides = [1, 1]} : vector<8x256xf32> to vector<8x64xf32>
    %87 = vector.extract_strided_slice %85 {offsets = [0, 64], sizes = [8, 64], strides = [1, 1]} : vector<8x256xf32> to vector<8x64xf32>
    %88 = vector.extract_strided_slice %85 {offsets = [0, 128], sizes = [8, 64], strides = [1, 1]} : vector<8x256xf32> to vector<8x64xf32>
    %cst_22 = arith.constant 2.000000e+00 : f32
    %89 = vector.broadcast %cst_22 : f32 to vector<8x64xf32>
    %90 = arith.mulf %89, %88 : vector<8x64xf32>
    %cst_23 = arith.constant 1.000000e+00 : f32
    %91 = vector.broadcast %cst_23 : f32 to vector<8x64xf32>
    %92 = arith.subf %90, %91 : vector<8x64xf32>
    %93 = vector.extract_strided_slice %85 {offsets = [0, 192], sizes = [8, 64], strides = [1, 1]} : vector<8x256xf32> to vector<8x64xf32>
    %94 = arith.mulf %87, %74 : vector<8x64xf32>
    %95 = arith.mulf %86, %92 : vector<8x64xf32>
    %96 = arith.addf %94, %95 : vector<8x64xf32>
    %97 = math.tanh %96 : vector<8x64xf32>
    %98 = arith.mulf %93, %97 : vector<8x64xf32>
    %99 = vector.extract_strided_slice %6 {offsets = [32, 0], sizes = [8, 256], strides = [1, 1]} : vector<72x256xf32> to vector<8x256xf32>
    %100 = arith.truncf %98 : vector<8x64xf32> to vector<8x64xbf16>
    %cst_24 = arith.constant dense<0.000000e+00> : vector<8x256xf32>
    %101 = tpu.matmul %100, %7, %cst_24 {dimension_numbers = #tpu.dot_dimension_numbers<[1], [0], [0], [1], [0, 0, 1, 1], [], []>} : vector<8x64xbf16>, vector<64x256xbf16>, vector<8x256xf32> -> vector<8x256xf32>
    %102 = arith.addf %99, %101 : vector<8x256xf32>
    %103 = arith.negf %102 : vector<8x256xf32>
    %104 = math.exp %103 : vector<8x256xf32>
    %cst_25 = arith.constant 1.000000e+00 : f32
    %105 = vector.broadcast %cst_25 : f32 to vector<8x256xf32>
    %106 = arith.addf %105, %104 : vector<8x256xf32>
    %107 = arith.divf %105, %106 : vector<8x256xf32>
    %108 = vector.extract_strided_slice %107 {offsets = [0, 0], sizes = [8, 64], strides = [1, 1]} : vector<8x256xf32> to vector<8x64xf32>
    %109 = vector.extract_strided_slice %107 {offsets = [0, 64], sizes = [8, 64], strides = [1, 1]} : vector<8x256xf32> to vector<8x64xf32>
    %110 = vector.extract_strided_slice %107 {offsets = [0, 128], sizes = [8, 64], strides = [1, 1]} : vector<8x256xf32> to vector<8x64xf32>
    %cst_26 = arith.constant 2.000000e+00 : f32
    %111 = vector.broadcast %cst_26 : f32 to vector<8x64xf32>
    %112 = arith.mulf %111, %110 : vector<8x64xf32>
    %cst_27 = arith.constant 1.000000e+00 : f32
    %113 = vector.broadcast %cst_27 : f32 to vector<8x64xf32>
    %114 = arith.subf %112, %113 : vector<8x64xf32>
    %115 = vector.extract_strided_slice %107 {offsets = [0, 192], sizes = [8, 64], strides = [1, 1]} : vector<8x256xf32> to vector<8x64xf32>
    %116 = arith.mulf %109, %96 : vector<8x64xf32>
    %117 = arith.mulf %108, %114 : vector<8x64xf32>
    %118 = arith.addf %116, %117 : vector<8x64xf32>
    %119 = math.tanh %118 : vector<8x64xf32>
    %120 = arith.mulf %115, %119 : vector<8x64xf32>
    %121 = vector.extract_strided_slice %6 {offsets = [40, 0], sizes = [8, 256], strides = [1, 1]} : vector<72x256xf32> to vector<8x256xf32>
    %122 = arith.truncf %120 : vector<8x64xf32> to vector<8x64xbf16>
    %cst_28 = arith.constant dense<0.000000e+00> : vector<8x256xf32>
    %123 = tpu.matmul %122, %7, %cst_28 {dimension_numbers = #tpu.dot_dimension_numbers<[1], [0], [0], [1], [0, 0, 1, 1], [], []>} : vector<8x64xbf16>, vector<64x256xbf16>, vector<8x256xf32> -> vector<8x256xf32>
    %124 = arith.addf %121, %123 : vector<8x256xf32>
    %125 = arith.negf %124 : vector<8x256xf32>
    %126 = math.exp %125 : vector<8x256xf32>
    %cst_29 = arith.constant 1.000000e+00 : f32
    %127 = vector.broadcast %cst_29 : f32 to vector<8x256xf32>
    %128 = arith.addf %127, %126 : vector<8x256xf32>
    %129 = arith.divf %127, %128 : vector<8x256xf32>
    %130 = vector.extract_strided_slice %129 {offsets = [0, 0], sizes = [8, 64], strides = [1, 1]} : vector<8x256xf32> to vector<8x64xf32>
    %131 = vector.extract_strided_slice %129 {offsets = [0, 64], sizes = [8, 64], strides = [1, 1]} : vector<8x256xf32> to vector<8x64xf32>
    %132 = vector.extract_strided_slice %129 {offsets = [0, 128], sizes = [8, 64], strides = [1, 1]} : vector<8x256xf32> to vector<8x64xf32>
    %cst_30 = arith.constant 2.000000e+00 : f32
    %133 = vector.broadcast %cst_30 : f32 to vector<8x64xf32>
    %134 = arith.mulf %133, %132 : vector<8x64xf32>
    %cst_31 = arith.constant 1.000000e+00 : f32
    %135 = vector.broadcast %cst_31 : f32 to vector<8x64xf32>
    %136 = arith.subf %134, %135 : vector<8x64xf32>
    %137 = vector.extract_strided_slice %129 {offsets = [0, 192], sizes = [8, 64], strides = [1, 1]} : vector<8x256xf32> to vector<8x64xf32>
    %138 = arith.mulf %131, %118 : vector<8x64xf32>
    %139 = arith.mulf %130, %136 : vector<8x64xf32>
    %140 = arith.addf %138, %139 : vector<8x64xf32>
    %141 = math.tanh %140 : vector<8x64xf32>
    %142 = arith.mulf %137, %141 : vector<8x64xf32>
    %143 = vector.extract_strided_slice %6 {offsets = [48, 0], sizes = [8, 256], strides = [1, 1]} : vector<72x256xf32> to vector<8x256xf32>
    %144 = arith.truncf %142 : vector<8x64xf32> to vector<8x64xbf16>
    %cst_32 = arith.constant dense<0.000000e+00> : vector<8x256xf32>
    %145 = tpu.matmul %144, %7, %cst_32 {dimension_numbers = #tpu.dot_dimension_numbers<[1], [0], [0], [1], [0, 0, 1, 1], [], []>} : vector<8x64xbf16>, vector<64x256xbf16>, vector<8x256xf32> -> vector<8x256xf32>
    %146 = arith.addf %143, %145 : vector<8x256xf32>
    %147 = arith.negf %146 : vector<8x256xf32>
    %148 = math.exp %147 : vector<8x256xf32>
    %cst_33 = arith.constant 1.000000e+00 : f32
    %149 = vector.broadcast %cst_33 : f32 to vector<8x256xf32>
    %150 = arith.addf %149, %148 : vector<8x256xf32>
    %151 = arith.divf %149, %150 : vector<8x256xf32>
    %152 = vector.extract_strided_slice %151 {offsets = [0, 0], sizes = [8, 64], strides = [1, 1]} : vector<8x256xf32> to vector<8x64xf32>
    %153 = vector.extract_strided_slice %151 {offsets = [0, 64], sizes = [8, 64], strides = [1, 1]} : vector<8x256xf32> to vector<8x64xf32>
    %154 = vector.extract_strided_slice %151 {offsets = [0, 128], sizes = [8, 64], strides = [1, 1]} : vector<8x256xf32> to vector<8x64xf32>
    %cst_34 = arith.constant 2.000000e+00 : f32
    %155 = vector.broadcast %cst_34 : f32 to vector<8x64xf32>
    %156 = arith.mulf %155, %154 : vector<8x64xf32>
    %cst_35 = arith.constant 1.000000e+00 : f32
    %157 = vector.broadcast %cst_35 : f32 to vector<8x64xf32>
    %158 = arith.subf %156, %157 : vector<8x64xf32>
    %159 = vector.extract_strided_slice %151 {offsets = [0, 192], sizes = [8, 64], strides = [1, 1]} : vector<8x256xf32> to vector<8x64xf32>
    %160 = arith.mulf %153, %140 : vector<8x64xf32>
    %161 = arith.mulf %152, %158 : vector<8x64xf32>
    %162 = arith.addf %160, %161 : vector<8x64xf32>
    %163 = math.tanh %162 : vector<8x64xf32>
    %164 = arith.mulf %159, %163 : vector<8x64xf32>
    %165 = vector.extract_strided_slice %6 {offsets = [56, 0], sizes = [8, 256], strides = [1, 1]} : vector<72x256xf32> to vector<8x256xf32>
    %166 = arith.truncf %164 : vector<8x64xf32> to vector<8x64xbf16>
    %cst_36 = arith.constant dense<0.000000e+00> : vector<8x256xf32>
    %167 = tpu.matmul %166, %7, %cst_36 {dimension_numbers = #tpu.dot_dimension_numbers<[1], [0], [0], [1], [0, 0, 1, 1], [], []>} : vector<8x64xbf16>, vector<64x256xbf16>, vector<8x256xf32> -> vector<8x256xf32>
    %168 = arith.addf %165, %167 : vector<8x256xf32>
    %169 = arith.negf %168 : vector<8x256xf32>
    %170 = math.exp %169 : vector<8x256xf32>
    %cst_37 = arith.constant 1.000000e+00 : f32
    %171 = vector.broadcast %cst_37 : f32 to vector<8x256xf32>
    %172 = arith.addf %171, %170 : vector<8x256xf32>
    %173 = arith.divf %171, %172 : vector<8x256xf32>
    %174 = vector.extract_strided_slice %173 {offsets = [0, 0], sizes = [8, 64], strides = [1, 1]} : vector<8x256xf32> to vector<8x64xf32>
    %175 = vector.extract_strided_slice %173 {offsets = [0, 64], sizes = [8, 64], strides = [1, 1]} : vector<8x256xf32> to vector<8x64xf32>
    %176 = vector.extract_strided_slice %173 {offsets = [0, 128], sizes = [8, 64], strides = [1, 1]} : vector<8x256xf32> to vector<8x64xf32>
    %cst_38 = arith.constant 2.000000e+00 : f32
    %177 = vector.broadcast %cst_38 : f32 to vector<8x64xf32>
    %178 = arith.mulf %177, %176 : vector<8x64xf32>
    %cst_39 = arith.constant 1.000000e+00 : f32
    %179 = vector.broadcast %cst_39 : f32 to vector<8x64xf32>
    %180 = arith.subf %178, %179 : vector<8x64xf32>
    %181 = vector.extract_strided_slice %173 {offsets = [0, 192], sizes = [8, 64], strides = [1, 1]} : vector<8x256xf32> to vector<8x64xf32>
    %182 = arith.mulf %175, %162 : vector<8x64xf32>
    %183 = arith.mulf %174, %180 : vector<8x64xf32>
    %184 = arith.addf %182, %183 : vector<8x64xf32>
    %185 = math.tanh %184 : vector<8x64xf32>
    %186 = arith.mulf %181, %185 : vector<8x64xf32>
    %187 = vector.extract_strided_slice %6 {offsets = [64, 0], sizes = [8, 256], strides = [1, 1]} : vector<72x256xf32> to vector<8x256xf32>
    %188 = arith.truncf %186 : vector<8x64xf32> to vector<8x64xbf16>
    %cst_40 = arith.constant dense<0.000000e+00> : vector<8x256xf32>
    %189 = tpu.matmul %188, %7, %cst_40 {dimension_numbers = #tpu.dot_dimension_numbers<[1], [0], [0], [1], [0, 0, 1, 1], [], []>} : vector<8x64xbf16>, vector<64x256xbf16>, vector<8x256xf32> -> vector<8x256xf32>
    %190 = arith.addf %187, %189 : vector<8x256xf32>
    %191 = arith.negf %190 : vector<8x256xf32>
    %192 = math.exp %191 : vector<8x256xf32>
    %cst_41 = arith.constant 1.000000e+00 : f32
    %193 = vector.broadcast %cst_41 : f32 to vector<8x256xf32>
    %194 = arith.addf %193, %192 : vector<8x256xf32>
    %195 = arith.divf %193, %194 : vector<8x256xf32>
    %196 = vector.extract_strided_slice %195 {offsets = [0, 0], sizes = [8, 64], strides = [1, 1]} : vector<8x256xf32> to vector<8x64xf32>
    %197 = vector.extract_strided_slice %195 {offsets = [0, 64], sizes = [8, 64], strides = [1, 1]} : vector<8x256xf32> to vector<8x64xf32>
    %198 = vector.extract_strided_slice %195 {offsets = [0, 128], sizes = [8, 64], strides = [1, 1]} : vector<8x256xf32> to vector<8x64xf32>
    %cst_42 = arith.constant 2.000000e+00 : f32
    %199 = vector.broadcast %cst_42 : f32 to vector<8x64xf32>
    %200 = arith.mulf %199, %198 : vector<8x64xf32>
    %cst_43 = arith.constant 1.000000e+00 : f32
    %201 = vector.broadcast %cst_43 : f32 to vector<8x64xf32>
    %202 = arith.subf %200, %201 : vector<8x64xf32>
    %203 = vector.extract_strided_slice %195 {offsets = [0, 192], sizes = [8, 64], strides = [1, 1]} : vector<8x256xf32> to vector<8x64xf32>
    %204 = arith.mulf %197, %184 : vector<8x64xf32>
    %205 = arith.mulf %196, %202 : vector<8x64xf32>
    %206 = arith.addf %204, %205 : vector<8x64xf32>
    %207 = math.tanh %206 : vector<8x64xf32>
    %208 = arith.mulf %203, %207 : vector<8x64xf32>
    %209 = vector.extract_strided_slice %208 {offsets = [0, 32], sizes = [8, 32], strides = [1, 1]} : vector<8x64xf32> to vector<8x32xf32>
    %c0_44 = arith.constant 0 : index
    %c0_45 = arith.constant 0 : index
    %210 = vector.load %arg5[%c0_44, %c0_45] : memref<32x32xbf16, #tpu.memory_space<vmem>>, vector<32x32xbf16>
    %211 = arith.truncf %209 : vector<8x32xf32> to vector<8x32xbf16>
    %cst_46 = arith.constant dense<0.000000e+00> : vector<8x32xf32>
    %212 = tpu.matmul %211, %210, %cst_46 {dimension_numbers = #tpu.dot_dimension_numbers<[1], [0], [0], [1], [0, 0, 1, 1], [], []>} : vector<8x32xbf16>, vector<32x32xbf16>, vector<8x32xf32> -> vector<8x32xf32>
    %c0_47 = arith.constant 0 : index
    %c0_48 = arith.constant 0 : index
    %213 = vector.load %arg6[%c0_47, %c0_48] : memref<1x32xf32, #tpu.memory_space<vmem>>, vector<1x32xf32>
    %214 = vector.broadcast %213 : vector<1x32xf32> to vector<8x32xf32>
    %215 = arith.addf %212, %214 : vector<8x32xf32>
    %cst_49 = arith.constant 0.000000e+00 : f32
    %216 = vector.broadcast %cst_49 : f32 to vector<8x32xf32>
    %217 = arith.maximumf %215, %216 : vector<8x32xf32>
    %c0_50 = arith.constant 0 : index
    %c0_51 = arith.constant 0 : index
    %218 = vector.load %arg7[%c0_50, %c0_51] : memref<32x32xbf16, #tpu.memory_space<vmem>>, vector<32x32xbf16>
    %219 = arith.truncf %217 : vector<8x32xf32> to vector<8x32xbf16>
    %cst_52 = arith.constant dense<0.000000e+00> : vector<8x32xf32>
    %220 = tpu.matmul %219, %218, %cst_52 {dimension_numbers = #tpu.dot_dimension_numbers<[1], [0], [0], [1], [0, 0, 1, 1], [], []>} : vector<8x32xbf16>, vector<32x32xbf16>, vector<8x32xf32> -> vector<8x32xf32>
    %c0_53 = arith.constant 0 : index
    %c0_54 = arith.constant 0 : index
    %221 = vector.load %arg4[%c0_53, %c0_54] : memref<8x16xf32, #tpu.memory_space<vmem>>, vector<8x16xf32>
    %c0_55 = arith.constant 0 : index
    %c0_56 = arith.constant 0 : index
    %222 = vector.load %arg8[%c0_55, %c0_56] : memref<16x32xbf16, #tpu.memory_space<vmem>>, vector<16x32xbf16>
    %223 = arith.truncf %221 : vector<8x16xf32> to vector<8x16xbf16>
    %cst_57 = arith.constant dense<0.000000e+00> : vector<8x32xf32>
    %224 = tpu.matmul %223, %222, %cst_57 {dimension_numbers = #tpu.dot_dimension_numbers<[1], [0], [0], [1], [0, 0, 1, 1], [], []>} : vector<8x16xbf16>, vector<16x32xbf16>, vector<8x32xf32> -> vector<8x32xf32>
    %225 = arith.addf %220, %224 : vector<8x32xf32>
    %c0_58 = arith.constant 0 : index
    %c0_59 = arith.constant 0 : index
    %226 = vector.load %arg9[%c0_58, %c0_59] : memref<1x32xf32, #tpu.memory_space<vmem>>, vector<1x32xf32>
    %227 = vector.broadcast %226 : vector<1x32xf32> to vector<8x32xf32>
    %228 = arith.addf %225, %227 : vector<8x32xf32>
    %c0_60 = arith.constant 0 : index
    %c0_61 = arith.constant 0 : index
    %229 = vector.load %arg10[%c0_60, %c0_61] : memref<32x1024xbf16, #tpu.memory_space<vmem>>, vector<32x1024xbf16>
    %230 = arith.truncf %228 : vector<8x32xf32> to vector<8x32xbf16>
    %cst_62 = arith.constant dense<0.000000e+00> : vector<8x1024xf32>
    %231 = tpu.matmul %230, %229, %cst_62 {dimension_numbers = #tpu.dot_dimension_numbers<[1], [0], [0], [1], [0, 0, 1, 1], [], []>} : vector<8x32xbf16>, vector<32x1024xbf16>, vector<8x1024xf32> -> vector<8x1024xf32>
    %232 = tpu.iota {dimensions = array<i32: 0>} : vector<8x128xi32>
    %cst_63 = arith.constant 0.000000e+00 : f32
    %233 = vector.broadcast %cst_63 : f32 to vector<8x128xf32>
    %c0_i32 = arith.constant 0 : i32
    %234 = vector.broadcast %c0_i32 : i32 to vector<8x128xi32>
    %235 = arith.cmpi eq, %232, %234 : vector<8x128xi32>
    %236 = vector.extract_strided_slice %231 {offsets = [0, 0], sizes = [8, 128], strides = [1, 1]} : vector<8x1024xf32> to vector<8x128xf32>
    %cst_64 = arith.constant 0.000000e+00 : f32
    %237 = vector.broadcast %cst_64 : f32 to vector<8x128xf32>
    %238 = arith.select %235, %236, %237 : vector<8x128xi1>, vector<8x128xf32>
    %239 = arith.addf %233, %238 : vector<8x128xf32>
    %c1_i32 = arith.constant 1 : i32
    %240 = vector.broadcast %c1_i32 : i32 to vector<8x128xi32>
    %241 = arith.cmpi eq, %232, %240 : vector<8x128xi32>
    %242 = vector.extract_strided_slice %231 {offsets = [0, 128], sizes = [8, 128], strides = [1, 1]} : vector<8x1024xf32> to vector<8x128xf32>
    %cst_65 = arith.constant 0.000000e+00 : f32
    %243 = vector.broadcast %cst_65 : f32 to vector<8x128xf32>
    %244 = arith.select %241, %242, %243 : vector<8x128xi1>, vector<8x128xf32>
    %245 = arith.addf %239, %244 : vector<8x128xf32>
    %c2_i32 = arith.constant 2 : i32
    %246 = vector.broadcast %c2_i32 : i32 to vector<8x128xi32>
    %247 = arith.cmpi eq, %232, %246 : vector<8x128xi32>
    %248 = vector.extract_strided_slice %231 {offsets = [0, 256], sizes = [8, 128], strides = [1, 1]} : vector<8x1024xf32> to vector<8x128xf32>
    %cst_66 = arith.constant 0.000000e+00 : f32
    %249 = vector.broadcast %cst_66 : f32 to vector<8x128xf32>
    %250 = arith.select %247, %248, %249 : vector<8x128xi1>, vector<8x128xf32>
    %251 = arith.addf %245, %250 : vector<8x128xf32>
    %c3_i32 = arith.constant 3 : i32
    %252 = vector.broadcast %c3_i32 : i32 to vector<8x128xi32>
    %253 = arith.cmpi eq, %232, %252 : vector<8x128xi32>
    %254 = vector.extract_strided_slice %231 {offsets = [0, 384], sizes = [8, 128], strides = [1, 1]} : vector<8x1024xf32> to vector<8x128xf32>
    %cst_67 = arith.constant 0.000000e+00 : f32
    %255 = vector.broadcast %cst_67 : f32 to vector<8x128xf32>
    %256 = arith.select %253, %254, %255 : vector<8x128xi1>, vector<8x128xf32>
    %257 = arith.addf %251, %256 : vector<8x128xf32>
    %c4_i32 = arith.constant 4 : i32
    %258 = vector.broadcast %c4_i32 : i32 to vector<8x128xi32>
    %259 = arith.cmpi eq, %232, %258 : vector<8x128xi32>
    %260 = vector.extract_strided_slice %231 {offsets = [0, 512], sizes = [8, 128], strides = [1, 1]} : vector<8x1024xf32> to vector<8x128xf32>
    %cst_68 = arith.constant 0.000000e+00 : f32
    %261 = vector.broadcast %cst_68 : f32 to vector<8x128xf32>
    %262 = arith.select %259, %260, %261 : vector<8x128xi1>, vector<8x128xf32>
    %263 = arith.addf %257, %262 : vector<8x128xf32>
    %c5_i32 = arith.constant 5 : i32
    %264 = vector.broadcast %c5_i32 : i32 to vector<8x128xi32>
    %265 = arith.cmpi eq, %232, %264 : vector<8x128xi32>
    %266 = vector.extract_strided_slice %231 {offsets = [0, 640], sizes = [8, 128], strides = [1, 1]} : vector<8x1024xf32> to vector<8x128xf32>
    %cst_69 = arith.constant 0.000000e+00 : f32
    %267 = vector.broadcast %cst_69 : f32 to vector<8x128xf32>
    %268 = arith.select %265, %266, %267 : vector<8x128xi1>, vector<8x128xf32>
    %269 = arith.addf %263, %268 : vector<8x128xf32>
    %c6_i32 = arith.constant 6 : i32
    %270 = vector.broadcast %c6_i32 : i32 to vector<8x128xi32>
    %271 = arith.cmpi eq, %232, %270 : vector<8x128xi32>
    %272 = vector.extract_strided_slice %231 {offsets = [0, 768], sizes = [8, 128], strides = [1, 1]} : vector<8x1024xf32> to vector<8x128xf32>
    %cst_70 = arith.constant 0.000000e+00 : f32
    %273 = vector.broadcast %cst_70 : f32 to vector<8x128xf32>
    %274 = arith.select %271, %272, %273 : vector<8x128xi1>, vector<8x128xf32>
    %275 = arith.addf %269, %274 : vector<8x128xf32>
    %c7_i32 = arith.constant 7 : i32
    %276 = vector.broadcast %c7_i32 : i32 to vector<8x128xi32>
    %277 = arith.cmpi eq, %232, %276 : vector<8x128xi32>
    %278 = vector.extract_strided_slice %231 {offsets = [0, 896], sizes = [8, 128], strides = [1, 1]} : vector<8x1024xf32> to vector<8x128xf32>
    %cst_71 = arith.constant 0.000000e+00 : f32
    %279 = vector.broadcast %cst_71 : f32 to vector<8x128xf32>
    %280 = arith.select %277, %278, %279 : vector<8x128xi1>, vector<8x128xf32>
    %281 = arith.addf %275, %280 : vector<8x128xf32>
    %c0_72 = arith.constant 0 : index
    %c0_73 = arith.constant 0 : index
    %282 = vector.load %arg11[%c0_72, %c0_73] : memref<8x128xf32, #tpu.memory_space<vmem>>, vector<8x128xf32>
    tpu.vector_store %arg11[%c0_72, %c0_73], %281 {strides = array<i32>} : memref<8x128xf32, #tpu.memory_space<vmem>>, vector<8x128xf32>,
    return
  }
}

</mosaic_0001>

<llo_original>
// kernel: forward_pallas.1
$region0: #{forward_pallas.1}
  #allocation0 [shape = 'u32[]', space=smem, size = 0x4, offset = 0x4, fixed_abs, tag = 'smem constant byte address 0x4 - core index']
  #allocation1 [shape = 'u32[144,128]{1,0:T(1,128)}', space=vmem, size = 0x12000, scoped, tag = 'internal scratch']
  %s0 = inlined_call_operand.vmem [shape: f32[72,32], index: 0, kind: input, shape index: {}]
  %s1 = inlined_call_operand.vmem [shape: bf16[32,256], index: 1, kind: input, shape index: {}]
  %s2 = inlined_call_operand.vmem [shape: f32[1,256], index: 2, kind: input, shape index: {}]
  %s3 = inlined_call_operand.vmem [shape: bf16[64,256], index: 3, kind: input, shape index: {}]
  %s4 = inlined_call_operand.vmem [shape: f32[8,16], index: 4, kind: input, shape index: {}]
  %s5 = inlined_call_operand.vmem [shape: bf16[32,32], index: 5, kind: input, shape index: {}]
  %s6 = inlined_call_operand.vmem [shape: f32[1,32], index: 6, kind: input, shape index: {}]
  %s7 = inlined_call_operand.vmem [shape: bf16[32,32], index: 7, kind: input, shape index: {}]
  %s8 = inlined_call_operand.vmem [shape: bf16[16,32], index: 8, kind: input, shape index: {}]
  %s9 = inlined_call_operand.vmem [shape: f32[1,32], index: 9, kind: input, shape index: {}]
  %s10 = inlined_call_operand.vmem [shape: bf16[32,1024], index: 10, kind: input, shape index: {}]
  %s11 = inlined_call_operand.vmem [shape: f32[8,128], index: 11, kind: output, shape index: {}]
  %s12 = sld [smem:[#allocation0]]
  $region54: #{forward_pallas.1} parent=0
    _
  %s14 = ssub.s32 1, %s12
  %s15 = scalar_select 0, %s14, %s12
  // Predicated region
  $region2: #{forward_pallas.1} parent=0 // pred_check
    _
  $region3: #{forward_pallas.1} parent=0 // pred_check_branch
    %17 = sbr.rel (0) target = $region5
  $region4: #{forward_pallas.1} parent=0 // pred_region
    _
  $region5: #{forward_pallas.1} parent=0 // pred_fallthru
    _
  // Predicated region
  $region6: #{forward_pallas.1} parent=0 // pred_check
    _
  $region7: #{forward_pallas.1} parent=0 // pred_check_branch
    %19 = sbr.rel (0) target = $region9
  $region8: #{forward_pallas.1} parent=0 // pred_region
    _
  $region9: #{forward_pallas.1} parent=0 // pred_fallthru
    _
  // Predicated region
  $region10: #{forward_pallas.1} parent=0 // pred_check
    _
  $region11: #{forward_pallas.1} parent=0 // pred_check_branch
    %21 = sbr.rel (0) target = $region13
  $region12: #{forward_pallas.1} parent=0 // pred_region
    _
  $region13: #{forward_pallas.1} parent=0 // pred_fallthru
    _
  // Predicated region
  $region14: #{forward_pallas.1} parent=0 // pred_check
    _
  $region15: #{forward_pallas.1} parent=0 // pred_check_branch
    %23 = sbr.rel (0) target = $region17
  $region16: #{forward_pallas.1} parent=0 // pred_region
    _
  $region17: #{forward_pallas.1} parent=0 // pred_fallthru
    _
  // Predicated region
  $region18: #{forward_pallas.1} parent=0 // pred_check
    _
  $region19: #{forward_pallas.1} parent=0 // pred_check_branch
    %25 = sbr.rel (0) target = $region21
  $region20: #{forward_pallas.1} parent=0 // pred_region
    _
  $region21: #{forward_pallas.1} parent=0 // pred_fallthru
    _
  // Predicated region
  $region22: #{forward_pallas.1} parent=0 // pred_check
    _
  $region23: #{forward_pallas.1} parent=0 // pred_check_branch
    %27 = sbr.rel (0) target = $region25
  $region24: #{forward_pallas.1} parent=0 // pred_region
    _
  $region25: #{forward_pallas.1} parent=0 // pred_fallthru
    _
  // Predicated region
  $region26: #{forward_pallas.1} parent=0 // pred_check
    _
  $region27: #{forward_pallas.1} parent=0 // pred_check_branch
    %29 = sbr.rel (0) target = $region29
  $region28: #{forward_pallas.1} parent=0 // pred_region
    _
  $region29: #{forward_pallas.1} parent=0 // pred_fallthru
    _
  // Predicated region
  $region30: #{forward_pallas.1} parent=0 // pred_check
    _
  $region31: #{forward_pallas.1} parent=0 // pred_check_branch
    %31 = sbr.rel (0) target = $region33
  $region32: #{forward_pallas.1} parent=0 // pred_region
    _
  $region33: #{forward_pallas.1} parent=0 // pred_fallthru
    _
  // Predicated region
  $region34: #{forward_pallas.1} parent=0 // pred_check
    _
  $region35: #{forward_pallas.1} parent=0 // pred_check_branch
    %33 = sbr.rel (0) target = $region37
  $region36: #{forward_pallas.1} parent=0 // pred_region
    _
  $region37: #{forward_pallas.1} parent=0 // pred_fallthru
    _
  // Predicated region
  $region38: #{forward_pallas.1} parent=0 // pred_check
    _
  $region39: #{forward_pallas.1} parent=0 // pred_check_branch
    %35 = sbr.rel (0) target = $region41
  $region40: #{forward_pallas.1} parent=0 // pred_region
    _
  $region41: #{forward_pallas.1} parent=0 // pred_fallthru
    _
  // Predicated region
  $region42: #{forward_pallas.1} parent=0 // pred_check
    _
  $region43: #{forward_pallas.1} parent=0 // pred_check_branch
    %37 = sbr.rel (0) target = $region45
  $region44: #{forward_pallas.1} parent=0 // pred_region
    _
  $region45: #{forward_pallas.1} parent=0 // pred_fallthru
    _
  %v39 = vld [vmem:[%s0] sm:$0xff]
  %v40 = vld [vmem:[%s0 + $0x8] sm:$0xff]
  %v41 = vld [vmem:[%s0 + $0x10] sm:$0xff]
  %v42 = vld [vmem:[%s0 + $0x18] sm:$0xff]
  %v43 = vld [vmem:[%s0 + $0x20] sm:$0xff]
  %v44 = vld [vmem:[%s0 + $0x28] sm:$0xff]
  %v45 = vld [vmem:[%s0 + $0x30] sm:$0xff]
  %v46 = vld [vmem:[%s0 + $0x38] sm:$0xff]
  %v47 = vld [vmem:[%s0 + $0x40] sm:$0xff]
  %v48 = vld [vmem:[%s1] sm:$0xff]
  %v49 = vld [vmem:[%s1 + $0x8] sm:$0xff]
  %v50 = vld [vmem:[%s1 + $0x10] sm:$0xff]
  %v51 = vld [vmem:[%s1 + $0x18] sm:$0xff]
  %v52 = vpack.c.bf16 %v40, %v39
  %v53 = vpack.c.bf16 %v42, %v41
  %v54 = vpack.c.bf16 %v44, %v43
  %v55 = vpack.c.bf16 %v46, %v45
  %v56 = vpack.c.bf16 %v47, %v47
  %v57 = vld [vmem:[%s2] sm:$0x3]
  %v59 = vlaneseq
  %v60 = vshrl.u32 %v59, 7
  %v61 = vsub.s32 0, %v60
  %v62 = vrot.slane %v57, %v61
  %v63 = vlaneseq
  %v64 = vshrl.u32 %v63, 7
  %v65 = vsub.s32 1, %v64
  %v66 = vrot.slane %v57, %v65
  %v73 = vunpack.c.l.b16 %v48
  %v74 = vunpack.c.h.b16 %v48
  %v75 = vunpack.c.l.b16 %v49
  %v76 = vunpack.c.h.b16 %v49
  %v77 = vunpack.c.l.b16 %v50
  %v78 = vunpack.c.h.b16 %v50
  %v79 = vunpack.c.l.b16 %v51
  %v80 = vunpack.c.h.b16 %v51
  %v81 = vpack.c.b16 %v75, %v73
  %v82 = vpack.c.b16 %v76, %v74
  %v83 = vpack.c.b16 %v79, %v77
  %v84 = vpack.c.b16 %v80, %v78
  %vm89 = vcmask 261120
  %v91 = vsel %vm89, %v52, 0
  %v94 = vsel %vm89, %v53, 0
  %v97 = vsel %vm89, %v54, 0
  %v100 = vsel %vm89, %v55, 0
  %v103 = vsel %vm89, %v56, 0
  %105 = vmatprep.subr.bf16.mxu0 %v82
  %106 = vmatpush1.bf16.msra.mxu0 %v81
  %107 = vmatprep.subr.bf16.mxu0 %v84
  %108 = vmatpush1.bf16.msra.mxu0 %v83
  %109 = vmatprep.subr.bf16.mxu0 0
  %110 = vmatpush1.bf16.msra.mxu0 0
  %111 = vmatprep.subr.bf16.mxu0 0
  %112 = vmatpush1.bf16.msra.mxu0 0
  %113 = vmatprep.subr.bf16.mxu0 0
  %114 = vmatpush1.bf16.msra.mxu0 0
  %115 = vmatprep.subr.bf16.mxu0 0
  %116 = vmatpush1.bf16.msra.mxu0 0
  %117 = vmatprep.subr.bf16.mxu0 0
  %118 = vmatpush1.bf16.msra.mxu0 0
  %119 = vmatprep.subr.bf16.mxu0 0
  %120 = vmatpush1.bf16.msra.mxu0 0
  %121 = vmatprep.subr.bf16.mxu0 0
  %122 = vmatpush1.bf16.msra.mxu0 0
  %123 = vmatprep.subr.bf16.mxu0 0
  %124 = vmatpush1.bf16.msra.mxu0 0
  %125 = vmatprep.subr.bf16.mxu0 0
  %126 = vmatpush1.bf16.msra.mxu0 0
  %127 = vmatprep.subr.bf16.mxu0 0
  %128 = vmatpush1.bf16.msra.mxu0 0
  %129 = vmatprep.subr.bf16.mxu0 0
  %130 = vmatpush1.bf16.msra.mxu0 0
  %131 = vmatprep.subr.bf16.mxu0 0
  %132 = vmatpush1.bf16.msra.mxu0 0
  %133 = vmatprep.subr.bf16.mxu0 0
  %134 = vmatpush1.bf16.msra.mxu0 0
  %135 = vmatprep.subr.bf16.mxu0 0
  %136 = vmatpush1.bf16.msra.mxu0 0
  %137 = vmatprep.mubr.bf16.mxu0 0
  %138 = vmatmul.mubr.bf16.gmra.mrb[0].mxu0 %v91
  %v139 = vpop.f32.mrb[0].mxu0
  %v140 = vadd.f32 %v62, %v139
  %v141 = vpop.f32.mrb[0].mxu0
  %v142 = vadd.f32 %v66, %v141
  %v143 = vpop.f32.mrb[0].mxu0
  %v144 = vadd.f32 %v62, %v143
  %v145 = vpop.f32.mrb[0].mxu0
  %v146 = vadd.f32 %v66, %v145
  %147 = vmatprep.mubr.bf16.mxu0 0
  %148 = vmatmul.mubr.bf16.gmra.mrb[0].mxu0 %v94
  %v149 = vpop.f32.mrb[0].mxu0
  %v150 = vadd.f32 %v62, %v149
  %v151 = vpop.f32.mrb[0].mxu0
  %v152 = vadd.f32 %v66, %v151
  %v153 = vpop.f32.mrb[0].mxu0
  %v154 = vadd.f32 %v62, %v153
  %v155 = vpop.f32.mrb[0].mxu0
  %v156 = vadd.f32 %v66, %v155
  %157 = vmatprep.mubr.bf16.mxu0 0
  %158 = vmatmul.mubr.bf16.gmra.mrb[0].mxu0 %v97
  %v159 = vpop.f32.mrb[0].mxu0
  %v160 = vadd.f32 %v62, %v159
  %v161 = vpop.f32.mrb[0].mxu0
  %v162 = vadd.f32 %v66, %v161
  %v163 = vpop.f32.mrb[0].mxu0
  %v164 = vadd.f32 %v62, %v163
  %v165 = vpop.f32.mrb[0].mxu0
  %v166 = vadd.f32 %v66, %v165
  %167 = vmatprep.mubr.bf16.mxu0 0
  %168 = vmatmul.mubr.bf16.gmra.mrb[0].mxu0 %v100
  %v169 = vpop.f32.mrb[0].mxu0
  %v170 = vadd.f32 %v62, %v169
  %v171 = vpop.f32.mrb[0].mxu0
  %v172 = vadd.f32 %v66, %v171
  %v173 = vpop.f32.mrb[0].mxu0
  %v174 = vadd.f32 %v62, %v173
  %v175 = vpop.f32.mrb[0].mxu0
  %v176 = vadd.f32 %v66, %v175
  %177 = vmatprep.mubr.bf16.mxu0 0
  %178 = vmatmul.mubr.bf16.gmra.mrb[0].mxu0 %v103
  %v179 = vpop.f32.mrb[0].mxu0
  %v180 = vadd.f32 %v62, %v179
  %v181 = vpop.f32.mrb[0].mxu0
  %v182 = vadd.f32 %v66, %v181
  %v183 = vpop.f32.mrb[0].mxu0
  %v184 = vpop.f32.mrb[0].mxu0
  %185 = vdwg.mxu0
  %v186 = vld [vmem:[%s3] sm:$0xff]
  %v187 = vld [vmem:[%s3 + $0x8] sm:$0xff]
  %v188 = vld [vmem:[%s3 + $0x10] sm:$0xff]
  %v189 = vld [vmem:[%s3 + $0x18] sm:$0xff]
  %v190 = vld [vmem:[%s3 + $0x20] sm:$0xff]
  %v191 = vld [vmem:[%s3 + $0x28] sm:$0xff]
  %v192 = vld [vmem:[%s3 + $0x30] sm:$0xff]
  %v193 = vld [vmem:[%s3 + $0x38] sm:$0xff]
  %v194 = vlaneseq
  %v195 = vand.u32 %v194, 127
  %v196 = vxor.u32 %v140, 2147483648
  %v197 = vxor.u32 %v142, 2147483648
  %v198 = vmul.f32 %v196, 1.442695
  %v199 = vpow.pop %v198
  %v200 = vmul.f32 %v197, 1.442695
  %v201 = vpow.pop %v200
  %v202 = vadd.f32 %v199, 1.0
  %v203 = vadd.f32 %v201, 1.0
  %v204 = vrcp.pop %v202
  %v205 = vmul.f32 1.0, %v204
  %v206 = vrcp.pop %v203
  %v207 = vmul.f32 1.0, %v206
  %v208 = vmul.f32 %v207, 2.0
  %v209 = vsub.f32 %v208, 1.0
  %v210 = vmul.f32 %v205, 0.0
  %v211 = vmul.f32 %v205, %v209
  %213 = vrot.lane.b32.xlu0 %v211, 64
  %v214 = vpop.permute.xlu0 %213
  %v216 = vadd.f32 %v210, %v214
  %vm217 = vcmp.lt.s32.totalorder %v195, 32
  %219 = vrot.lane.b32.xlu0 %v216, 64
  %v220 = vpop.permute.xlu0 %219
  %v222 = vsel %vm217, %v220, 0.0
  %v223 = vtanh.pop %v222
  %225 = vrot.lane.b32.xlu0 %v223, 64
  %v226 = vpop.permute.xlu0 %225
  %v228 = vmul.f32 %v207, %v226
  %v229 = vpack.c.bf16 %v228, %v228
  %231 = vrot.lane.b32.xlu0 %v229, 64
  %v232 = vpop.permute.xlu0 %231
  %v241 = vunpack.c.l.b16 %v186
  %v242 = vunpack.c.h.b16 %v186
  %v243 = vunpack.c.l.b16 %v187
  %v244 = vunpack.c.h.b16 %v187
  %v245 = vunpack.c.l.b16 %v188
  %v246 = vunpack.c.h.b16 %v188
  %v247 = vunpack.c.l.b16 %v189
  %v248 = vunpack.c.h.b16 %v189
  %v249 = vunpack.c.l.b16 %v190
  %v250 = vunpack.c.h.b16 %v190
  %v251 = vunpack.c.l.b16 %v191
  %v252 = vunpack.c.h.b16 %v191
  %v253 = vunpack.c.l.b16 %v192
  %v254 = vunpack.c.h.b16 %v192
  %v255 = vunpack.c.l.b16 %v193
  %v256 = vunpack.c.h.b16 %v193
  %v257 = vpack.c.b16 %v243, %v241
  %v258 = vpack.c.b16 %v244, %v242
  %v259 = vpack.c.b16 %v247, %v245
  %v260 = vpack.c.b16 %v248, %v246
  %v261 = vpack.c.b16 %v251, %v249
  %v262 = vpack.c.b16 %v252, %v250
  %v263 = vpack.c.b16 %v255, %v253
  %v264 = vpack.c.b16 %v256, %v254
  %vm273 = vcmask 523264
  %v275 = vsel %vm273, %v232, 0
  %277 = vmatprep.subr.bf16.mxu0 %v258
  %278 = vmatpush1.bf16.msra.mxu0 %v257
  %279 = vmatprep.subr.bf16.mxu0 %v260
  %280 = vmatpush1.bf16.msra.mxu0 %v259
  %281 = vmatprep.subr.bf16.mxu0 %v262
  %282 = vmatpush1.bf16.msra.mxu0 %v261
  %283 = vmatprep.subr.bf16.mxu0 %v264
  %284 = vmatpush1.bf16.msra.mxu0 %v263
  %285 = vmatprep.subr.bf16.mxu0 0
  %286 = vmatpush1.bf16.msra.mxu0 0
  %287 = vmatprep.subr.bf16.mxu0 0
  %288 = vmatpush1.bf16.msra.mxu0 0
  %289 = vmatprep.subr.bf16.mxu0 0
  %290 = vmatpush1.bf16.msra.mxu0 0
  %291 = vmatprep.subr.bf16.mxu0 0
  %292 = vmatpush1.bf16.msra.mxu0 0
  %293 = vmatprep.subr.bf16.mxu0 0
  %294 = vmatpush1.bf16.msra.mxu0 0
  %295 = vmatprep.subr.bf16.mxu0 0
  %296 = vmatpush1.bf16.msra.mxu0 0
  %297 = vmatprep.subr.bf16.mxu0 0
  %298 = vmatpush1.bf16.msra.mxu0 0
  %299 = vmatprep.subr.bf16.mxu0 0
  %300 = vmatpush1.bf16.msra.mxu0 0
  %301 = vmatprep.subr.bf16.mxu0 0
  %302 = vmatpush1.bf16.msra.mxu0 0
  %303 = vmatprep.subr.bf16.mxu0 0
  %304 = vmatpush1.bf16.msra.mxu0 0
  %305 = vmatprep.subr.bf16.mxu0 0
  %306 = vmatpush1.bf16.msra.mxu0 0
  %307 = vmatprep.subr.bf16.mxu0 0
  %308 = vmatpush1.bf16.msra.mxu0 0
  %309 = vmatprep.mubr.bf16.mxu0 0
  %310 = vmatmul.mubr.bf16.gmra.mrb[0].mxu0 %v275
  %v311 = vpop.f32.mrb[0].mxu0
  %v312 = vadd.f32 0.0, %v311
  %v313 = vpop.f32.mrb[0].mxu0
  %v314 = vadd.f32 0.0, %v313
  %v315 = vpop.f32.mrb[0].mxu0
  %v316 = vpop.f32.mrb[0].mxu0
  %317 = vdwg.mxu0
  %v318 = vadd.f32 %v144, %v312
  %v319 = vadd.f32 %v146, %v314
  %v320 = vxor.u32 %v318, 2147483648
  %v321 = vxor.u32 %v319, 2147483648
  %v322 = vmul.f32 %v320, 1.442695
  %v323 = vpow.pop %v322
  %v324 = vmul.f32 %v321, 1.442695
  %v325 = vpow.pop %v324
  %v326 = vadd.f32 %v323, 1.0
  %v327 = vadd.f32 %v325, 1.0
  %v328 = vrcp.pop %v326
  %v329 = vmul.f32 1.0, %v328
  %v330 = vrcp.pop %v327
  %v331 = vmul.f32 1.0, %v330
  %v332 = vmul.f32 %v331, 2.0
  %v333 = vsub.f32 %v332, 1.0
  %335 = vrot.lane.b32.xlu0 %v222, 64
  %v336 = vpop.permute.xlu0 %335
  %v338 = vmul.f32 %v329, %v336
  %v339 = vmul.f32 %v329, %v333
  %341 = vrot.lane.b32.xlu0 %v339, 64
  %v342 = vpop.permute.xlu0 %341
  %v344 = vadd.f32 %v338, %v342
  %v345 = vtanh.pop %v344
  %v346 = vmul.f32 %v331, %v345
  %v347 = vpack.c.bf16 %v346, %v346
  %349 = vrot.lane.b32.xlu0 %v347, 64
  %v350 = vpop.permute.xlu0 %349
  %v352 = vsel %vm273, %v350, 0
  %354 = vmatprep.subr.bf16.mxu0 %v258
  %355 = vmatpush1.bf16.msra.mxu0 %v257
  %356 = vmatprep.subr.bf16.mxu0 %v260
  %357 = vmatpush1.bf16.msra.mxu0 %v259
  %358 = vmatprep.subr.bf16.mxu0 %v262
  %359 = vmatpush1.bf16.msra.mxu0 %v261
  %360 = vmatprep.subr.bf16.mxu0 %v264
  %361 = vmatpush1.bf16.msra.mxu0 %v263
  %362 = vmatprep.subr.bf16.mxu0 0
  %363 = vmatpush1.bf16.msra.mxu0 0
  %364 = vmatprep.subr.bf16.mxu0 0
  %365 = vmatpush1.bf16.msra.mxu0 0
  %366 = vmatprep.subr.bf16.mxu0 0
  %367 = vmatpush1.bf16.msra.mxu0 0
  %368 = vmatprep.subr.bf16.mxu0 0
  %369 = vmatpush1.bf16.msra.mxu0 0
  %370 = vmatprep.subr.bf16.mxu0 0
  %371 = vmatpush1.bf16.msra.mxu0 0
  %372 = vmatprep.subr.bf16.mxu0 0
  %373 = vmatpush1.bf16.msra.mxu0 0
  %374 = vmatprep.subr.bf16.mxu0 0
  %375 = vmatpush1.bf16.msra.mxu0 0
  %376 = vmatprep.subr.bf16.mxu0 0
  %377 = vmatpush1.bf16.msra.mxu0 0
  %378 = vmatprep.subr.bf16.mxu0 0
  %379 = vmatpush1.bf16.msra.mxu0 0
  %380 = vmatprep.subr.bf16.mxu0 0
  %381 = vmatpush1.bf16.msra.mxu0 0
  %382 = vmatprep.subr.bf16.mxu0 0
  %383 = vmatpush1.bf16.msra.mxu0 0
  %384 = vmatprep.subr.bf16.mxu0 0
  %385 = vmatpush1.bf16.msra.mxu0 0
  %386 = vmatprep.mubr.bf16.mxu0 0
  %387 = vmatmul.mubr.bf16.gmra.mrb[0].mxu0 %v352
  %v388 = vpop.f32.mrb[0].mxu0
  %v389 = vadd.f32 0.0, %v388
  %v390 = vpop.f32.mrb[0].mxu0
  %v391 = vadd.f32 0.0, %v390
  %v392 = vpop.f32.mrb[0].mxu0
  %v393 = vpop.f32.mrb[0].mxu0
  %394 = vdwg.mxu0
  %v395 = vadd.f32 %v150, %v389
  %v396 = vadd.f32 %v152, %v391
  %v397 = vxor.u32 %v395, 2147483648
  %v398 = vxor.u32 %v396, 2147483648
  %v399 = vmul.f32 %v397, 1.442695
  %v400 = vpow.pop %v399
  %v401 = vmul.f32 %v398, 1.442695
  %v402 = vpow.pop %v401
  %v403 = vadd.f32 %v400, 1.0
  %v404 = vadd.f32 %v402, 1.0
  %v405 = vrcp.pop %v403
  %v406 = vmul.f32 1.0, %v405
  %v407 = vrcp.pop %v404
  %v408 = vmul.f32 1.0, %v407
  %v409 = vmul.f32 %v408, 2.0
  %v410 = vsub.f32 %v409, 1.0
  %v411 = vmul.f32 %v406, %v344
  %v412 = vmul.f32 %v406, %v410
  %414 = vrot.lane.b32.xlu0 %v412, 64
  %v415 = vpop.permute.xlu0 %414
  %v417 = vadd.f32 %v411, %v415
  %v418 = vtanh.pop %v417
  %v419 = vmul.f32 %v408, %v418
  %v420 = vpack.c.bf16 %v419, %v419
  %422 = vrot.lane.b32.xlu0 %v420, 64
  %v423 = vpop.permute.xlu0 %422
  %v425 = vsel %vm273, %v423, 0
  %427 = vmatprep.subr.bf16.mxu0 %v258
  %428 = vmatpush1.bf16.msra.mxu0 %v257
  %429 = vmatprep.subr.bf16.mxu0 %v260
  %430 = vmatpush1.bf16.msra.mxu0 %v259
  %431 = vmatprep.subr.bf16.mxu0 %v262
  %432 = vmatpush1.bf16.msra.mxu0 %v261
  %433 = vmatprep.subr.bf16.mxu0 %v264
  %434 = vmatpush1.bf16.msra.mxu0 %v263
  %435 = vmatprep.subr.bf16.mxu0 0
  %436 = vmatpush1.bf16.msra.mxu0 0
  %437 = vmatprep.subr.bf16.mxu0 0
  %438 = vmatpush1.bf16.msra.mxu0 0
  %439 = vmatprep.subr.bf16.mxu0 0
  %440 = vmatpush1.bf16.msra.mxu0 0
  %441 = vmatprep.subr.bf16.mxu0 0
  %442 = vmatpush1.bf16.msra.mxu0 0
  %443 = vmatprep.subr.bf16.mxu0 0
  %444 = vmatpush1.bf16.msra.mxu0 0
  %445 = vmatprep.subr.bf16.mxu0 0
  %446 = vmatpush1.bf16.msra.mxu0 0
  %447 = vmatprep.subr.bf16.mxu0 0
  %448 = vmatpush1.bf16.msra.mxu0 0
  %449 = vmatprep.subr.bf16.mxu0 0
  %450 = vmatpush1.bf16.msra.mxu0 0
  %451 = vmatprep.subr.bf16.mxu0 0
  %452 = vmatpush1.bf16.msra.mxu0 0
  %453 = vmatprep.subr.bf16.mxu0 0
  %454 = vmatpush1.bf16.msra.mxu0 0
  %455 = vmatprep.subr.bf16.mxu0 0
  %456 = vmatpush1.bf16.msra.mxu0 0
  %457 = vmatprep.subr.bf16.mxu0 0
  %458 = vmatpush1.bf16.msra.mxu0 0
  %459 = vmatprep.mubr.bf16.mxu0 0
  %460 = vmatmul.mubr.bf16.gmra.mrb[0].mxu0 %v425
  %v461 = vpop.f32.mrb[0].mxu0
  %v462 = vadd.f32 0.0, %v461
  %v463 = vpop.f32.mrb[0].mxu0
  %v464 = vadd.f32 0.0, %v463
  %v465 = vpop.f32.mrb[0].mxu0
  %v466 = vpop.f32.mrb[0].mxu0
  %467 = vdwg.mxu0
  %v468 = vadd.f32 %v154, %v462
  %v469 = vadd.f32 %v156, %v464
  %v470 = vxor.u32 %v468, 2147483648
  %v471 = vxor.u32 %v469, 2147483648
  %v472 = vmul.f32 %v470, 1.442695
  %v473 = vpow.pop %v472
  %v474 = vmul.f32 %v471, 1.442695
  %v475 = vpow.pop %v474
  %v476 = vadd.f32 %v473, 1.0
  %v477 = vadd.f32 %v475, 1.0
  %v478 = vrcp.pop %v476
  %v479 = vmul.f32 1.0, %v478
  %v480 = vrcp.pop %v477
  %v481 = vmul.f32 1.0, %v480
  %v482 = vmul.f32 %v481, 2.0
  %v483 = vsub.f32 %v482, 1.0
  %v484 = vmul.f32 %v479, %v417
  %v485 = vmul.f32 %v479, %v483
  %487 = vrot.lane.b32.xlu0 %v485, 64
  %v488 = vpop.permute.xlu0 %487
  %v490 = vadd.f32 %v484, %v488
  %v491 = vtanh.pop %v490
  %v492 = vmul.f32 %v481, %v491
  %v493 = vpack.c.bf16 %v492, %v492
  %495 = vrot.lane.b32.xlu0 %v493, 64
  %v496 = vpop.permute.xlu0 %495
  %v498 = vsel %vm273, %v496, 0
  %500 = vmatprep.subr.bf16.mxu0 %v258
  %501 = vmatpush1.bf16.msra.mxu0 %v257
  %502 = vmatprep.subr.bf16.mxu0 %v260
  %503 = vmatpush1.bf16.msra.mxu0 %v259
  %504 = vmatprep.subr.bf16.mxu0 %v262
  %505 = vmatpush1.bf16.msra.mxu0 %v261
  %506 = vmatprep.subr.bf16.mxu0 %v264
  %507 = vmatpush1.bf16.msra.mxu0 %v263
  %508 = vmatprep.subr.bf16.mxu0 0
  %509 = vmatpush1.bf16.msra.mxu0 0
  %510 = vmatprep.subr.bf16.mxu0 0
  %511 = vmatpush1.bf16.msra.mxu0 0
  %512 = vmatprep.subr.bf16.mxu0 0
  %513 = vmatpush1.bf16.msra.mxu0 0
  %514 = vmatprep.subr.bf16.mxu0 0
  %515 = vmatpush1.bf16.msra.mxu0 0
  %516 = vmatprep.subr.bf16.mxu0 0
  %517 = vmatpush1.bf16.msra.mxu0 0
  %518 = vmatprep.subr.bf16.mxu0 0
  %519 = vmatpush1.bf16.msra.mxu0 0
  %520 = vmatprep.subr.bf16.mxu0 0
  %521 = vmatpush1.bf16.msra.mxu0 0
  %522 = vmatprep.subr.bf16.mxu0 0
  %523 = vmatpush1.bf16.msra.mxu0 0
  %524 = vmatprep.subr.bf16.mxu0 0
  %525 = vmatpush1.bf16.msra.mxu0 0
  %526 = vmatprep.subr.bf16.mxu0 0
  %527 = vmatpush1.bf16.msra.mxu0 0
  %528 = vmatprep.subr.bf16.mxu0 0
  %529 = vmatpush1.bf16.msra.mxu0 0
  %530 = vmatprep.subr.bf16.mxu0 0
  %531 = vmatpush1.bf16.msra.mxu0 0
  %532 = vmatprep.mubr.bf16.mxu0 0
  %533 = vmatmul.mubr.bf16.gmra.mrb[0].mxu0 %v498
  %v534 = vpop.f32.mrb[0].mxu0
  %v535 = vadd.f32 0.0, %v534
  %v536 = vpop.f32.mrb[0].mxu0
  %v537 = vadd.f32 0.0, %v536
  %v538 = vpop.f32.mrb[0].mxu0
  %v539 = vpop.f32.mrb[0].mxu0
  %540 = vdwg.mxu0
  %v541 = vadd.f32 %v160, %v535
  %v542 = vadd.f32 %v162, %v537
  %v543 = vxor.u32 %v541, 2147483648
  %v544 = vxor.u32 %v542, 2147483648
  %v545 = vmul.f32 %v543, 1.442695
  %v546 = vpow.pop %v545
  %v547 = vmul.f32 %v544, 1.442695
  %v548 = vpow.pop %v547
  %v549 = vadd.f32 %v546, 1.0
  %v550 = vadd.f32 %v548, 1.0
  %v551 = vrcp.pop %v549
  %v552 = vmul.f32 1.0, %v551
  %v553 = vrcp.pop %v550
  %v554 = vmul.f32 1.0, %v553
  %v555 = vmul.f32 %v554, 2.0
  %v556 = vsub.f32 %v555, 1.0
  %v557 = vmul.f32 %v552, %v490
  %v558 = vmul.f32 %v552, %v556
  %560 = vrot.lane.b32.xlu0 %v558, 64
  %v561 = vpop.permute.xlu0 %560
  %v563 = vadd.f32 %v557, %v561
  %v564 = vtanh.pop %v563
  %v565 = vmul.f32 %v554, %v564
  %v566 = vpack.c.bf16 %v565, %v565
  %568 = vrot.lane.b32.xlu0 %v566, 64
  %v569 = vpop.permute.xlu0 %568
  %v571 = vsel %vm273, %v569, 0
  %573 = vmatprep.subr.bf16.mxu0 %v258
  %574 = vmatpush1.bf16.msra.mxu0 %v257
  %575 = vmatprep.subr.bf16.mxu0 %v260
  %576 = vmatpush1.bf16.msra.mxu0 %v259
  %577 = vmatprep.subr.bf16.mxu0 %v262
  %578 = vmatpush1.bf16.msra.mxu0 %v261
  %579 = vmatprep.subr.bf16.mxu0 %v264
  %580 = vmatpush1.bf16.msra.mxu0 %v263
  %581 = vmatprep.subr.bf16.mxu0 0
  %582 = vmatpush1.bf16.msra.mxu0 0
  %583 = vmatprep.subr.bf16.mxu0 0
  %584 = vmatpush1.bf16.msra.mxu0 0
  %585 = vmatprep.subr.bf16.mxu0 0
  %586 = vmatpush1.bf16.msra.mxu0 0
  %587 = vmatprep.subr.bf16.mxu0 0
  %588 = vmatpush1.bf16.msra.mxu0 0
  %589 = vmatprep.subr.bf16.mxu0 0
  %590 = vmatpush1.bf16.msra.mxu0 0
  %591 = vmatprep.subr.bf16.mxu0 0
  %592 = vmatpush1.bf16.msra.mxu0 0
  %593 = vmatprep.subr.bf16.mxu0 0
  %594 = vmatpush1.bf16.msra.mxu0 0
  %595 = vmatprep.subr.bf16.mxu0 0
  %596 = vmatpush1.bf16.msra.mxu0 0
  %597 = vmatprep.subr.bf16.mxu0 0
  %598 = vmatpush1.bf16.msra.mxu0 0
  %599 = vmatprep.subr.bf16.mxu0 0
  %600 = vmatpush1.bf16.msra.mxu0 0
  %601 = vmatprep.subr.bf16.mxu0 0
  %602 = vmatpush1.bf16.msra.mxu0 0
  %603 = vmatprep.subr.bf16.mxu0 0
  %604 = vmatpush1.bf16.msra.mxu0 0
  %605 = vmatprep.mubr.bf16.mxu0 0
  %606 = vmatmul.mubr.bf16.gmra.mrb[0].mxu0 %v571
  %v607 = vpop.f32.mrb[0].mxu0
  %v608 = vadd.f32 0.0, %v607
  %v609 = vpop.f32.mrb[0].mxu0
  %v610 = vadd.f32 0.0, %v609
  %v611 = vpop.f32.mrb[0].mxu0
  %v612 = vpop.f32.mrb[0].mxu0
  %613 = vdwg.mxu0
  %v614 = vadd.f32 %v164, %v608
  %v615 = vadd.f32 %v166, %v610
  %v616 = vxor.u32 %v614, 2147483648
  %v617 = vxor.u32 %v615, 2147483648
  %v618 = vmul.f32 %v616, 1.442695
  %v619 = vpow.pop %v618
  %v620 = vmul.f32 %v617, 1.442695
  %v621 = vpow.pop %v620
  %v622 = vadd.f32 %v619, 1.0
  %v623 = vadd.f32 %v621, 1.0
  %v624 = vrcp.pop %v622
  %v625 = vmul.f32 1.0, %v624
  %v626 = vrcp.pop %v623
  %v627 = vmul.f32 1.0, %v626
  %v628 = vmul.f32 %v627, 2.0
  %v629 = vsub.f32 %v628, 1.0
  %v630 = vmul.f32 %v625, %v563
  %v631 = vmul.f32 %v625, %v629
  %633 = vrot.lane.b32.xlu0 %v631, 64
  %v634 = vpop.permute.xlu0 %633
  %v636 = vadd.f32 %v630, %v634
  %v637 = vtanh.pop %v636
  %v638 = vmul.f32 %v627, %v637
  %v639 = vpack.c.bf16 %v638, %v638
  %641 = vrot.lane.b32.xlu0 %v639, 64
  %v642 = vpop.permute.xlu0 %641
  %v644 = vsel %vm273, %v642, 0
  %646 = vmatprep.subr.bf16.mxu0 %v258
  %647 = vmatpush1.bf16.msra.mxu0 %v257
  %648 = vmatprep.subr.bf16.mxu0 %v260
  %649 = vmatpush1.bf16.msra.mxu0 %v259
  %650 = vmatprep.subr.bf16.mxu0 %v262
  %651 = vmatpush1.bf16.msra.mxu0 %v261
  %652 = vmatprep.subr.bf16.mxu0 %v264
  %653 = vmatpush1.bf16.msra.mxu0 %v263
  %654 = vmatprep.subr.bf16.mxu0 0
  %655 = vmatpush1.bf16.msra.mxu0 0
  %656 = vmatprep.subr.bf16.mxu0 0
  %657 = vmatpush1.bf16.msra.mxu0 0
  %658 = vmatprep.subr.bf16.mxu0 0
  %659 = vmatpush1.bf16.msra.mxu0 0
  %660 = vmatprep.subr.bf16.mxu0 0
  %661 = vmatpush1.bf16.msra.mxu0 0
  %662 = vmatprep.subr.bf16.mxu0 0
  %663 = vmatpush1.bf16.msra.mxu0 0
  %664 = vmatprep.subr.bf16.mxu0 0
  %665 = vmatpush1.bf16.msra.mxu0 0
  %666 = vmatprep.subr.bf16.mxu0 0
  %667 = vmatpush1.bf16.msra.mxu0 0
  %668 = vmatprep.subr.bf16.mxu0 0
  %669 = vmatpush1.bf16.msra.mxu0 0
  %670 = vmatprep.subr.bf16.mxu0 0
  %671 = vmatpush1.bf16.msra.mxu0 0
  %672 = vmatprep.subr.bf16.mxu0 0
  %673 = vmatpush1.bf16.msra.mxu0 0
  %674 = vmatprep.subr.bf16.mxu0 0
  %675 = vmatpush1.bf16.msra.mxu0 0
  %676 = vmatprep.subr.bf16.mxu0 0
  %677 = vmatpush1.bf16.msra.mxu0 0
  %678 = vmatprep.mubr.bf16.mxu0 0
  %679 = vmatmul.mubr.bf16.gmra.mrb[0].mxu0 %v644
  %v680 = vpop.f32.mrb[0].mxu0
  %v681 = vadd.f32 0.0, %v680
  %v682 = vpop.f32.mrb[0].mxu0
  %v683 = vadd.f32 0.0, %v682
  %v684 = vpop.f32.mrb[0].mxu0
  %v685 = vpop.f32.mrb[0].mxu0
  %686 = vdwg.mxu0
  %v687 = vadd.f32 %v170, %v681
  %v688 = vadd.f32 %v172, %v683
  %v689 = vxor.u32 %v687, 2147483648
  %v690 = vxor.u32 %v688, 2147483648
  %v691 = vmul.f32 %v689, 1.442695
  %v692 = vpow.pop %v691
  %v693 = vmul.f32 %v690, 1.442695
  %v694 = vpow.pop %v693
  %v695 = vadd.f32 %v692, 1.0
  %v696 = vadd.f32 %v694, 1.0
  %v697 = vrcp.pop %v695
  %v698 = vmul.f32 1.0, %v697
  %v699 = vrcp.pop %v696
  %v700 = vmul.f32 1.0, %v699
  %v701 = vmul.f32 %v700, 2.0
  %v702 = vsub.f32 %v701, 1.0
  %v703 = vmul.f32 %v698, %v636
  %v704 = vmul.f32 %v698, %v702
  %706 = vrot.lane.b32.xlu0 %v704, 64
  %v707 = vpop.permute.xlu0 %706
  %v709 = vadd.f32 %v703, %v707
  %v710 = vtanh.pop %v709
  %v711 = vmul.f32 %v700, %v710
  %v712 = vpack.c.bf16 %v711, %v711
  %714 = vrot.lane.b32.xlu0 %v712, 64
  %v715 = vpop.permute.xlu0 %714
  %v717 = vsel %vm273, %v715, 0
  %719 = vmatprep.subr.bf16.mxu0 %v258
  %720 = vmatpush1.bf16.msra.mxu0 %v257
  %721 = vmatprep.subr.bf16.mxu0 %v260
  %722 = vmatpush1.bf16.msra.mxu0 %v259
  %723 = vmatprep.subr.bf16.mxu0 %v262
  %724 = vmatpush1.bf16.msra.mxu0 %v261
  %725 = vmatprep.subr.bf16.mxu0 %v264
  %726 = vmatpush1.bf16.msra.mxu0 %v263
  %727 = vmatprep.subr.bf16.mxu0 0
  %728 = vmatpush1.bf16.msra.mxu0 0
  %729 = vmatprep.subr.bf16.mxu0 0
  %730 = vmatpush1.bf16.msra.mxu0 0
  %731 = vmatprep.subr.bf16.mxu0 0
  %732 = vmatpush1.bf16.msra.mxu0 0
  %733 = vmatprep.subr.bf16.mxu0 0
  %734 = vmatpush1.bf16.msra.mxu0 0
  %735 = vmatprep.subr.bf16.mxu0 0
  %736 = vmatpush1.bf16.msra.mxu0 0
  %737 = vmatprep.subr.bf16.mxu0 0
  %738 = vmatpush1.bf16.msra.mxu0 0
  %739 = vmatprep.subr.bf16.mxu0 0
  %740 = vmatpush1.bf16.msra.mxu0 0
  %741 = vmatprep.subr.bf16.mxu0 0
  %742 = vmatpush1.bf16.msra.mxu0 0
  %743 = vmatprep.subr.bf16.mxu0 0
  %744 = vmatpush1.bf16.msra.mxu0 0
  %745 = vmatprep.subr.bf16.mxu0 0
  %746 = vmatpush1.bf16.msra.mxu0 0
  %747 = vmatprep.subr.bf16.mxu0 0
  %748 = vmatpush1.bf16.msra.mxu0 0
  %749 = vmatprep.subr.bf16.mxu0 0
  %750 = vmatpush1.bf16.msra.mxu0 0
  %751 = vmatprep.mubr.bf16.mxu0 0
  %752 = vmatmul.mubr.bf16.gmra.mrb[0].mxu0 %v717
  %v753 = vpop.f32.mrb[0].mxu0
  %v754 = vadd.f32 0.0, %v753
  %v755 = vpop.f32.mrb[0].mxu0
  %v756 = vadd.f32 0.0, %v755
  %v757 = vpop.f32.mrb[0].mxu0
  %v758 = vpop.f32.mrb[0].mxu0
  %759 = vdwg.mxu0
  %v760 = vadd.f32 %v174, %v754
  %v761 = vadd.f32 %v176, %v756
  %v762 = vxor.u32 %v760, 2147483648
  %v763 = vxor.u32 %v761, 2147483648
  %v764 = vmul.f32 %v762, 1.442695
  %v765 = vpow.pop %v764
  %v766 = vmul.f32 %v763, 1.442695
  %v767 = vpow.pop %v766
  %v768 = vadd.f32 %v765, 1.0
  %v769 = vadd.f32 %v767, 1.0
  %v770 = vrcp.pop %v768
  %v771 = vmul.f32 1.0, %v770
  %v772 = vrcp.pop %v769
  %v773 = vmul.f32 1.0, %v772
  %v774 = vmul.f32 %v773, 2.0
  %v775 = vsub.f32 %v774, 1.0
  %v776 = vmul.f32 %v771, %v709
  %v777 = vmul.f32 %v771, %v775
  %779 = vrot.lane.b32.xlu0 %v777, 64
  %v780 = vpop.permute.xlu0 %779
  %v782 = vadd.f32 %v776, %v780
  %v783 = vtanh.pop %v782
  %v784 = vmul.f32 %v773, %v783
  %v785 = vpack.c.bf16 %v784, %v784
  %787 = vrot.lane.b32.xlu0 %v785, 64
  %v788 = vpop.permute.xlu0 %787
  %v790 = vsel %vm273, %v788, 0
  %792 = vmatprep.subr.bf16.mxu0 %v258
  %793 = vmatpush1.bf16.msra.mxu0 %v257
  %794 = vmatprep.subr.bf16.mxu0 %v260
  %795 = vmatpush1.bf16.msra.mxu0 %v259
  %796 = vmatprep.subr.bf16.mxu0 %v262
  %797 = vmatpush1.bf16.msra.mxu0 %v261
  %798 = vmatprep.subr.bf16.mxu0 %v264
  %799 = vmatpush1.bf16.msra.mxu0 %v263
  %800 = vmatprep.subr.bf16.mxu0 0
  %801 = vmatpush1.bf16.msra.mxu0 0
  %802 = vmatprep.subr.bf16.mxu0 0
  %803 = vmatpush1.bf16.msra.mxu0 0
  %804 = vmatprep.subr.bf16.mxu0 0
  %805 = vmatpush1.bf16.msra.mxu0 0
  %806 = vmatprep.subr.bf16.mxu0 0
  %807 = vmatpush1.bf16.msra.mxu0 0
  %808 = vmatprep.subr.bf16.mxu0 0
  %809 = vmatpush1.bf16.msra.mxu0 0
  %810 = vmatprep.subr.bf16.mxu0 0
  %811 = vmatpush1.bf16.msra.mxu0 0
  %812 = vmatprep.subr.bf16.mxu0 0
  %813 = vmatpush1.bf16.msra.mxu0 0
  %814 = vmatprep.subr.bf16.mxu0 0
  %815 = vmatpush1.bf16.msra.mxu0 0
  %816 = vmatprep.subr.bf16.mxu0 0
  %817 = vmatpush1.bf16.msra.mxu0 0
  %818 = vmatprep.subr.bf16.mxu0 0
  %819 = vmatpush1.bf16.msra.mxu0 0
  %820 = vmatprep.subr.bf16.mxu0 0
  %821 = vmatpush1.bf16.msra.mxu0 0
  %822 = vmatprep.subr.bf16.mxu0 0
  %823 = vmatpush1.bf16.msra.mxu0 0
  %824 = vmatprep.mubr.bf16.mxu0 0
  %825 = vmatmul.mubr.bf16.gmra.mrb[0].mxu0 %v790
  %v826 = vpop.f32.mrb[0].mxu0
  %v827 = vadd.f32 0.0, %v826
  %v828 = vpop.f32.mrb[0].mxu0
  %v829 = vadd.f32 0.0, %v828
  %v830 = vpop.f32.mrb[0].mxu0
  %v831 = vpop.f32.mrb[0].mxu0
  %832 = vdwg.mxu0
  %v833 = vadd.f32 %v180, %v827
  %v834 = vadd.f32 %v182, %v829
  %v835 = vxor.u32 %v833, 2147483648
  %v836 = vxor.u32 %v834, 2147483648
  %v837 = vmul.f32 %v835, 1.442695
  %v838 = vpow.pop %v837
  %v839 = vmul.f32 %v836, 1.442695
  %v840 = vpow.pop %v839
  %v841 = vadd.f32 %v838, 1.0
  %v842 = vadd.f32 %v840, 1.0
  %v843 = vrcp.pop %v841
  %v844 = vmul.f32 1.0, %v843
  %v845 = vrcp.pop %v842
  %v846 = vmul.f32 1.0, %v845
  %v847 = vmul.f32 %v846, 2.0
  %v848 = vsub.f32 %v847, 1.0
  %v849 = vmul.f32 %v844, %v782
  %v850 = vmul.f32 %v844, %v848
  %852 = vrot.lane.b32.xlu0 %v850, 64
  %v853 = vpop.permute.xlu0 %852
  %v855 = vadd.f32 %v849, %v853
  %v856 = vtanh.pop %v855
  %v857 = vmul.f32 %v846, %v856
  %v858 = vld [vmem:[%s5] sm:$0xf]
  %v859 = vld [vmem:[%s5 + $0x4] sm:$0xf]
  %v860 = vld [vmem:[%s5 + $0x8] sm:$0xf]
  %v861 = vld [vmem:[%s5 + $0xc] sm:$0xf]
  %v862 = vpack.c.bf16 %v857, %v857
  %v863 = vld [vmem:[%s6] sm:$0x1]
  %v865 = vlaneseq
  %v866 = vshrl.u32 %v865, 7
  %v867 = vsub.s32 0, %v866
  %v868 = vrot.slane %v863, %v867
  %871 = vrot.lane.b32.xlu0 %v862, 32
  %v872 = vpop.permute.xlu0 %871
  %v877 = vunpack.c.l.b16 %v858
  %v878 = vunpack.c.l.b16 %v859
  %v879 = vunpack.c.l.b16 %v860
  %v880 = vunpack.c.l.b16 %v861
  %v881 = vpack.c.b16 %v878, %v877
  %v882 = vpack.c.b16 %v880, %v879
  %v886 = vsel %vm89, %v872, 0
  %888 = vmatprep.subr.bf16.mxu0 0
  %889 = vmatpush1.bf16.msra.mxu0 %v881
  %890 = vmatprep.subr.bf16.mxu0 0
  %891 = vmatpush1.bf16.msra.mxu0 %v882
  %892 = vmatprep.subr.bf16.mxu0 0
  %893 = vmatpush1.bf16.msra.mxu0 0
  %894 = vmatprep.subr.bf16.mxu0 0
  %895 = vmatpush1.bf16.msra.mxu0 0
  %896 = vmatprep.subr.bf16.mxu0 0
  %897 = vmatpush1.bf16.msra.mxu0 0
  %898 = vmatprep.subr.bf16.mxu0 0
  %899 = vmatpush1.bf16.msra.mxu0 0
  %900 = vmatprep.subr.bf16.mxu0 0
  %901 = vmatpush1.bf16.msra.mxu0 0
  %902 = vmatprep.subr.bf16.mxu0 0
  %903 = vmatpush1.bf16.msra.mxu0 0
  %904 = vmatprep.subr.bf16.mxu0 0
  %905 = vmatpush1.bf16.msra.mxu0 0
  %906 = vmatprep.subr.bf16.mxu0 0
  %907 = vmatpush1.bf16.msra.mxu0 0
  %908 = vmatprep.subr.bf16.mxu0 0
  %909 = vmatpush1.bf16.msra.mxu0 0
  %910 = vmatprep.subr.bf16.mxu0 0
  %911 = vmatpush1.bf16.msra.mxu0 0
  %912 = vmatprep.subr.bf16.mxu0 0
  %913 = vmatpush1.bf16.msra.mxu0 0
  %914 = vmatprep.subr.bf16.mxu0 0
  %915 = vmatpush1.bf16.msra.mxu0 0
  %916 = vmatprep.subr.bf16.mxu0 0
  %917 = vmatpush1.bf16.msra.mxu0 0
  %918 = vmatprep.subr.bf16.mxu0 0
  %919 = vmatpush1.bf16.msra.mxu0 0
  %920 = vmatprep.mubr.bf16.mxu0 0
  %921 = vmatmul.mubr.bf16.gmra.mrb[0].mxu0 %v886
  %v922 = vpop.f32.mrb[0].mxu0
  %v923 = vadd.f32 %v868, %v922
  %v924 = vpop.f32.mrb[0].mxu0
  %v925 = vpop.f32.mrb[0].mxu0
  %v926 = vpop.f32.mrb[0].mxu0
  %927 = vdwg.mxu0
  %v928 = vmax.f32 %v923, 0.0
  %v929 = vld [vmem:[%s7] sm:$0xf]
  %v930 = vld [vmem:[%s7 + $0x4] sm:$0xf]
  %v931 = vld [vmem:[%s7 + $0x8] sm:$0xf]
  %v932 = vld [vmem:[%s7 + $0xc] sm:$0xf]
  %v933 = vpack.c.bf16 %v928, %v928
  %v934 = vld [vmem:[%s4] sm:$0xff]
  %v935 = vld [vmem:[%s8] sm:$0xf]
  %v936 = vld [vmem:[%s8 + $0x4] sm:$0xf]
  %v937 = vpack.c.bf16 %v934, %v934
  %v940 = vunpack.c.l.b16 %v935
  %v941 = vunpack.c.l.b16 %v936
  %v942 = vpack.c.b16 %v941, %v940
  %vm944 = vcmask 130048
  %v946 = vsel %vm944, %v937, 0
  %948 = vmatprep.subr.bf16.mxu0 0
  %949 = vmatpush1.bf16.msra.mxu0 %v942
  %950 = vmatprep.subr.bf16.mxu0 0
  %951 = vmatpush1.bf16.msra.mxu0 0
  %952 = vmatprep.subr.bf16.mxu0 0
  %953 = vmatpush1.bf16.msra.mxu0 0
  %954 = vmatprep.subr.bf16.mxu0 0
  %955 = vmatpush1.bf16.msra.mxu0 0
  %956 = vmatprep.subr.bf16.mxu0 0
  %957 = vmatpush1.bf16.msra.mxu0 0
  %958 = vmatprep.subr.bf16.mxu0 0
  %959 = vmatpush1.bf16.msra.mxu0 0
  %960 = vmatprep.subr.bf16.mxu0 0
  %961 = vmatpush1.bf16.msra.mxu0 0
  %962 = vmatprep.subr.bf16.mxu0 0
  %963 = vmatpush1.bf16.msra.mxu0 0
  %964 = vmatprep.subr.bf16.mxu0 0
  %965 = vmatpush1.bf16.msra.mxu0 0
  %966 = vmatprep.subr.bf16.mxu0 0
  %967 = vmatpush1.bf16.msra.mxu0 0
  %968 = vmatprep.subr.bf16.mxu0 0
  %969 = vmatpush1.bf16.msra.mxu0 0
  %970 = vmatprep.subr.bf16.mxu0 0
  %971 = vmatpush1.bf16.msra.mxu0 0
  %972 = vmatprep.subr.bf16.mxu0 0
  %973 = vmatpush1.bf16.msra.mxu0 0
  %974 = vmatprep.subr.bf16.mxu0 0
  %975 = vmatpush1.bf16.msra.mxu0 0
  %976 = vmatprep.subr.bf16.mxu0 0
  %977 = vmatpush1.bf16.msra.mxu0 0
  %978 = vmatprep.subr.bf16.mxu0 0
  %979 = vmatpush1.bf16.msra.mxu0 0
  %980 = vmatprep.mubr.bf16.mxu0 0
  %981 = vmatmul.mubr.bf16.gmra.mrb[0].mxu0 %v946
  %v982 = vpop.f32.mrb[0].mxu0
  %v983 = vadd.f32 0.0, %v982
  %v984 = vpop.f32.mrb[0].mxu0
  %v985 = vpop.f32.mrb[0].mxu0
  %v986 = vpop.f32.mrb[0].mxu0
  %987 = vdwg.mxu0
  %v992 = vunpack.c.l.b16 %v929
  %v993 = vunpack.c.l.b16 %v930
  %v994 = vunpack.c.l.b16 %v931
  %v995 = vunpack.c.l.b16 %v932
  %v996 = vpack.c.b16 %v993, %v992
  %v997 = vpack.c.b16 %v995, %v994
  %v1001 = vsel %vm89, %v933, 0
  %1003 = vmatprep.subr.bf16.mxu0 0
  %1004 = vmatpush1.bf16.msra.mxu0 %v996
  %1005 = vmatprep.subr.bf16.mxu0 0
  %1006 = vmatpush1.bf16.msra.mxu0 %v997
  %1007 = vmatprep.subr.bf16.mxu0 0
  %1008 = vmatpush1.bf16.msra.mxu0 0
  %1009 = vmatprep.subr.bf16.mxu0 0
  %1010 = vmatpush1.bf16.msra.mxu0 0
  %1011 = vmatprep.subr.bf16.mxu0 0
  %1012 = vmatpush1.bf16.msra.mxu0 0
  %1013 = vmatprep.subr.bf16.mxu0 0
  %1014 = vmatpush1.bf16.msra.mxu0 0
  %1015 = vmatprep.subr.bf16.mxu0 0
  %1016 = vmatpush1.bf16.msra.mxu0 0
  %1017 = vmatprep.subr.bf16.mxu0 0
  %1018 = vmatpush1.bf16.msra.mxu0 0
  %1019 = vmatprep.subr.bf16.mxu0 0
  %1020 = vmatpush1.bf16.msra.mxu0 0
  %1021 = vmatprep.subr.bf16.mxu0 0
  %1022 = vmatpush1.bf16.msra.mxu0 0
  %1023 = vmatprep.subr.bf16.mxu0 0
  %1024 = vmatpush1.bf16.msra.mxu0 0
  %1025 = vmatprep.subr.bf16.mxu0 0
  %1026 = vmatpush1.bf16.msra.mxu0 0
  %1027 = vmatprep.subr.bf16.mxu0 0
  %1028 = vmatpush1.bf16.msra.mxu0 0
  %1029 = vmatprep.subr.bf16.mxu0 0
  %1030 = vmatpush1.bf16.msra.mxu0 0
  %1031 = vmatprep.subr.bf16.mxu0 0
  %1032 = vmatpush1.bf16.msra.mxu0 0
  %1033 = vmatprep.subr.bf16.mxu0 0
  %1034 = vmatpush1.bf16.msra.mxu0 0
  %1035 = vmatprep.mubr.bf16.mxu0 0
  %1036 = vmatmul.mubr.bf16.gmra.mrb[0].mxu0 %v1001
  %v1037 = vpop.f32.mrb[0].mxu0
  %v1038 = vadd.f32 %v983, %v1037
  %v1039 = vpop.f32.mrb[0].mxu0
  %v1040 = vpop.f32.mrb[0].mxu0
  %v1041 = vpop.f32.mrb[0].mxu0
  %1042 = vdwg.mxu0
  %v1043 = vld [vmem:[%s9] sm:$0x1]
  %v1045 = vlaneseq
  %v1046 = vshrl.u32 %v1045, 7
  %v1047 = vsub.s32 0, %v1046
  %v1048 = vrot.slane %v1043, %v1047
  %v1050 = vadd.f32 %v1038, %v1048
  %v1051 = vld [vmem:[%s10] sm:$0xff]
  %v1052 = vld [vmem:[%s10 + $0x8] sm:$0xff]
  %v1053 = vld [vmem:[%s10 + $0x10] sm:$0xff]
  %v1054 = vld [vmem:[%s10 + $0x18] sm:$0xff]
  %v1055 = vld [vmem:[%s10 + $0x20] sm:$0xff]
  %v1056 = vld [vmem:[%s10 + $0x28] sm:$0xff]
  %v1057 = vld [vmem:[%s10 + $0x30] sm:$0xff]
  %v1058 = vld [vmem:[%s10 + $0x38] sm:$0xff]
  %v1059 = vld [vmem:[%s10 + $0x40] sm:$0xff]
  %v1060 = vld [vmem:[%s10 + $0x48] sm:$0xff]
  %v1061 = vld [vmem:[%s10 + $0x50] sm:$0xff]
  %v1062 = vld [vmem:[%s10 + $0x58] sm:$0xff]
  %v1063 = vld [vmem:[%s10 + $0x60] sm:$0xff]
  %v1064 = vld [vmem:[%s10 + $0x68] sm:$0xff]
  %v1065 = vld [vmem:[%s10 + $0x70] sm:$0xff]
  %v1066 = vld [vmem:[%s10 + $0x78] sm:$0xff]
  %v1067 = vpack.c.bf16 %v1050, %v1050
  %v1084 = vunpack.c.l.b16 %v1051
  %v1085 = vunpack.c.h.b16 %v1051
  %v1086 = vunpack.c.l.b16 %v1052
  %v1087 = vunpack.c.h.b16 %v1052
  %v1088 = vunpack.c.l.b16 %v1053
  %v1089 = vunpack.c.h.b16 %v1053
  %v1090 = vunpack.c.l.b16 %v1054
  %v1091 = vunpack.c.h.b16 %v1054
  %v1092 = vunpack.c.l.b16 %v1055
  %v1093 = vunpack.c.h.b16 %v1055
  %v1094 = vunpack.c.l.b16 %v1056
  %v1095 = vunpack.c.h.b16 %v1056
  %v1096 = vunpack.c.l.b16 %v1057
  %v1097 = vunpack.c.h.b16 %v1057
  %v1098 = vunpack.c.l.b16 %v1058
  %v1099 = vunpack.c.h.b16 %v1058
  %v1100 = vunpack.c.l.b16 %v1059
  %v1101 = vunpack.c.h.b16 %v1059
  %v1102 = vunpack.c.l.b16 %v1060
  %v1103 = vunpack.c.h.b16 %v1060
  %v1104 = vunpack.c.l.b16 %v1061
  %v1105 = vunpack.c.h.b16 %v1061
  %v1106 = vunpack.c.l.b16 %v1062
  %v1107 = vunpack.c.h.b16 %v1062
  %v1108 = vunpack.c.l.b16 %v1063
  %v1109 = vunpack.c.h.b16 %v1063
  %v1110 = vunpack.c.l.b16 %v1064
  %v1111 = vunpack.c.h.b16 %v1064
  %v1112 = vunpack.c.l.b16 %v1065
  %v1113 = vunpack.c.h.b16 %v1065
  %v1114 = vunpack.c.l.b16 %v1066
  %v1115 = vunpack.c.h.b16 %v1066
  %v1116 = vpack.c.b16 %v1092, %v1084
  %v1117 = vpack.c.b16 %v1093, %v1085
  %v1118 = vpack.c.b16 %v1094, %v1086
  %v1119 = vpack.c.b16 %v1095, %v1087
  %v1120 = vpack.c.b16 %v1096, %v1088
  %v1121 = vpack.c.b16 %v1097, %v1089
  %v1122 = vpack.c.b16 %v1098, %v1090
  %v1123 = vpack.c.b16 %v1099, %v1091
  %v1124 = vpack.c.b16 %v1108, %v1100
  %v1125 = vpack.c.b16 %v1109, %v1101
  %v1126 = vpack.c.b16 %v1110, %v1102
  %v1127 = vpack.c.b16 %v1111, %v1103
  %v1128 = vpack.c.b16 %v1112, %v1104
  %v1129 = vpack.c.b16 %v1113, %v1105
  %v1130 = vpack.c.b16 %v1114, %v1106
  %v1131 = vpack.c.b16 %v1115, %v1107
  %v1149 = vsel %vm89, %v1067, 0
  %1151 = vmatprep.subr.bf16.mxu0 %v1117
  %1152 = vmatpush1.bf16.msra.mxu0 %v1116
  %1153 = vmatprep.subr.bf16.mxu0 %v1125
  %1154 = vmatpush1.bf16.msra.mxu0 %v1124
  %1155 = vmatprep.subr.bf16.mxu0 0
  %1156 = vmatpush1.bf16.msra.mxu0 0
  %1157 = vmatprep.subr.bf16.mxu0 0
  %1158 = vmatpush1.bf16.msra.mxu0 0
  %1159 = vmatprep.subr.bf16.mxu0 0
  %1160 = vmatpush1.bf16.msra.mxu0 0
  %1161 = vmatprep.subr.bf16.mxu0 0
  %1162 = vmatpush1.bf16.msra.mxu0 0
  %1163 = vmatprep.subr.bf16.mxu0 0
  %1164 = vmatpush1.bf16.msra.mxu0 0
  %1165 = vmatprep.subr.bf16.mxu0 0
  %1166 = vmatpush1.bf16.msra.mxu0 0
  %1167 = vmatprep.subr.bf16.mxu0 0
  %1168 = vmatpush1.bf16.msra.mxu0 0
  %1169 = vmatprep.subr.bf16.mxu0 0
  %1170 = vmatpush1.bf16.msra.mxu0 0
  %1171 = vmatprep.subr.bf16.mxu0 0
  %1172 = vmatpush1.bf16.msra.mxu0 0
  %1173 = vmatprep.subr.bf16.mxu0 0
  %1174 = vmatpush1.bf16.msra.mxu0 0
  %1175 = vmatprep.subr.bf16.mxu0 0
  %1176 = vmatpush1.bf16.msra.mxu0 0
  %1177 = vmatprep.subr.bf16.mxu0 0
  %1178 = vmatpush1.bf16.msra.mxu0 0
  %1179 = vmatprep.subr.bf16.mxu0 0
  %1180 = vmatpush1.bf16.msra.mxu0 0
  %1181 = vmatprep.subr.bf16.mxu0 0
  %1182 = vmatpush1.bf16.msra.mxu0 0
  %1183 = vmatprep.mubr.bf16.mxu0 0
  %1184 = vmatmul.mubr.bf16.gmra.mrb[0].mxu0 %v1149
  %v1185 = vpop.f32.mrb[0].mxu0
  %v1186 = vadd.f32 0.0, %v1185
  %v1187 = vpop.f32.mrb[0].mxu0
  %v1188 = vadd.f32 0.0, %v1187
  %v1189 = vpop.f32.mrb[0].mxu0
  %v1190 = vpop.f32.mrb[0].mxu0
  %1191 = vdwg.mxu0
  %1192 = vmatprep.subr.bf16.mxu0 %v1119
  %1193 = vmatpush1.bf16.msra.mxu0 %v1118
  %1194 = vmatprep.subr.bf16.mxu0 %v1127
  %1195 = vmatpush1.bf16.msra.mxu0 %v1126
  %1196 = vmatprep.subr.bf16.mxu0 0
  %1197 = vmatpush1.bf16.msra.mxu0 0
  %1198 = vmatprep.subr.bf16.mxu0 0
  %1199 = vmatpush1.bf16.msra.mxu0 0
  %1200 = vmatprep.subr.bf16.mxu0 0
  %1201 = vmatpush1.bf16.msra.mxu0 0
  %1202 = vmatprep.subr.bf16.mxu0 0
  %1203 = vmatpush1.bf16.msra.mxu0 0
  %1204 = vmatprep.subr.bf16.mxu0 0
  %1205 = vmatpush1.bf16.msra.mxu0 0
  %1206 = vmatprep.subr.bf16.mxu0 0
  %1207 = vmatpush1.bf16.msra.mxu0 0
  %1208 = vmatprep.subr.bf16.mxu0 0
  %1209 = vmatpush1.bf16.msra.mxu0 0
  %1210 = vmatprep.subr.bf16.mxu0 0
  %1211 = vmatpush1.bf16.msra.mxu0 0
  %1212 = vmatprep.subr.bf16.mxu0 0
  %1213 = vmatpush1.bf16.msra.mxu0 0
  %1214 = vmatprep.subr.bf16.mxu0 0
  %1215 = vmatpush1.bf16.msra.mxu0 0
  %1216 = vmatprep.subr.bf16.mxu0 0
  %1217 = vmatpush1.bf16.msra.mxu0 0
  %1218 = vmatprep.subr.bf16.mxu0 0
  %1219 = vmatpush1.bf16.msra.mxu0 0
  %1220 = vmatprep.subr.bf16.mxu0 0
  %1221 = vmatpush1.bf16.msra.mxu0 0
  %1222 = vmatprep.subr.bf16.mxu0 0
  %1223 = vmatpush1.bf16.msra.mxu0 0
  %1224 = vmatprep.mubr.bf16.mxu0 0
  %1225 = vmatmul.mubr.bf16.gmra.mrb[0].mxu0 %v1149
  %v1226 = vpop.f32.mrb[0].mxu0
  %v1227 = vadd.f32 0.0, %v1226
  %v1228 = vpop.f32.mrb[0].mxu0
  %v1229 = vadd.f32 0.0, %v1228
  %v1230 = vpop.f32.mrb[0].mxu0
  %v1231 = vpop.f32.mrb[0].mxu0
  %1232 = vdwg.mxu0
  %1233 = vmatprep.subr.bf16.mxu0 %v1121
  %1234 = vmatpush1.bf16.msra.mxu0 %v1120
  %1235 = vmatprep.subr.bf16.mxu0 %v1129
  %1236 = vmatpush1.bf16.msra.mxu0 %v1128
  %1237 = vmatprep.subr.bf16.mxu0 0
  %1238 = vmatpush1.bf16.msra.mxu0 0
  %1239 = vmatprep.subr.bf16.mxu0 0
  %1240 = vmatpush1.bf16.msra.mxu0 0
  %1241 = vmatprep.subr.bf16.mxu0 0
  %1242 = vmatpush1.bf16.msra.mxu0 0
  %1243 = vmatprep.subr.bf16.mxu0 0
  %1244 = vmatpush1.bf16.msra.mxu0 0
  %1245 = vmatprep.subr.bf16.mxu0 0
  %1246 = vmatpush1.bf16.msra.mxu0 0
  %1247 = vmatprep.subr.bf16.mxu0 0
  %1248 = vmatpush1.bf16.msra.mxu0 0
  %1249 = vmatprep.subr.bf16.mxu0 0
  %1250 = vmatpush1.bf16.msra.mxu0 0
  %1251 = vmatprep.subr.bf16.mxu0 0
  %1252 = vmatpush1.bf16.msra.mxu0 0
  %1253 = vmatprep.subr.bf16.mxu0 0
  %1254 = vmatpush1.bf16.msra.mxu0 0
  %1255 = vmatprep.subr.bf16.mxu0 0
  %1256 = vmatpush1.bf16.msra.mxu0 0
  %1257 = vmatprep.subr.bf16.mxu0 0
  %1258 = vmatpush1.bf16.msra.mxu0 0
  %1259 = vmatprep.subr.bf16.mxu0 0
  %1260 = vmatpush1.bf16.msra.mxu0 0
  %1261 = vmatprep.subr.bf16.mxu0 0
  %1262 = vmatpush1.bf16.msra.mxu0 0
  %1263 = vmatprep.subr.bf16.mxu0 0
  %1264 = vmatpush1.bf16.msra.mxu0 0
  %1265 = vmatprep.mubr.bf16.mxu0 0
  %1266 = vmatmul.mubr.bf16.gmra.mrb[0].mxu0 %v1149
  %v1267 = vpop.f32.mrb[0].mxu0
  %v1268 = vadd.f32 0.0, %v1267
  %v1269 = vpop.f32.mrb[0].mxu0
  %v1270 = vadd.f32 0.0, %v1269
  %v1271 = vpop.f32.mrb[0].mxu0
  %v1272 = vpop.f32.mrb[0].mxu0
  %1273 = vdwg.mxu0
  %1274 = vmatprep.subr.bf16.mxu0 %v1123
  %1275 = vmatpush1.bf16.msra.mxu0 %v1122
  %1276 = vmatprep.subr.bf16.mxu0 %v1131
  %1277 = vmatpush1.bf16.msra.mxu0 %v1130
  %1278 = vmatprep.subr.bf16.mxu0 0
  %1279 = vmatpush1.bf16.msra.mxu0 0
  %1280 = vmatprep.subr.bf16.mxu0 0
  %1281 = vmatpush1.bf16.msra.mxu0 0
  %1282 = vmatprep.subr.bf16.mxu0 0
  %1283 = vmatpush1.bf16.msra.mxu0 0
  %1284 = vmatprep.subr.bf16.mxu0 0
  %1285 = vmatpush1.bf16.msra.mxu0 0
  %1286 = vmatprep.subr.bf16.mxu0 0
  %1287 = vmatpush1.bf16.msra.mxu0 0
  %1288 = vmatprep.subr.bf16.mxu0 0
  %1289 = vmatpush1.bf16.msra.mxu0 0
  %1290 = vmatprep.subr.bf16.mxu0 0
  %1291 = vmatpush1.bf16.msra.mxu0 0
  %1292 = vmatprep.subr.bf16.mxu0 0
  %1293 = vmatpush1.bf16.msra.mxu0 0
  %1294 = vmatprep.subr.bf16.mxu0 0
  %1295 = vmatpush1.bf16.msra.mxu0 0
  %1296 = vmatprep.subr.bf16.mxu0 0
  %1297 = vmatpush1.bf16.msra.mxu0 0
  %1298 = vmatprep.subr.bf16.mxu0 0
  %1299 = vmatpush1.bf16.msra.mxu0 0
  %1300 = vmatprep.subr.bf16.mxu0 0
  %1301 = vmatpush1.bf16.msra.mxu0 0
  %1302 = vmatprep.subr.bf16.mxu0 0
  %1303 = vmatpush1.bf16.msra.mxu0 0
  %1304 = vmatprep.subr.bf16.mxu0 0
  %1305 = vmatpush1.bf16.msra.mxu0 0
  %1306 = vmatprep.mubr.bf16.mxu0 0
  %1307 = vmatmul.mubr.bf16.gmra.mrb[0].mxu0 %v1149
  %v1308 = vpop.f32.mrb[0].mxu0
  %v1309 = vadd.f32 0.0, %v1308
  %v1310 = vpop.f32.mrb[0].mxu0
  %v1311 = vadd.f32 0.0, %v1310
  %v1312 = vpop.f32.mrb[0].mxu0
  %v1313 = vpop.f32.mrb[0].mxu0
  %1314 = vdwg.mxu0
  %v1315 = vlaneseq
  %v1316 = vshrl.u32 %v1315, 7
  %vm1317 = vcmp.eq.s32.totalorder %v1316, 0
  %v1318 = vsel %vm1317, %v1186, 0.0
  %v1319 = vadd.f32 %v1318, 0.0
  %vm1320 = vcmp.eq.s32.totalorder %v1316, 1
  %v1321 = vsel %vm1320, %v1188, 0.0
  %v1322 = vadd.f32 %v1319, %v1321
  %vm1323 = vcmp.eq.s32.totalorder %v1316, 2
  %v1324 = vsel %vm1323, %v1227, 0.0
  %v1325 = vadd.f32 %v1322, %v1324
  %vm1326 = vcmp.eq.s32.totalorder %v1316, 3
  %v1327 = vsel %vm1326, %v1229, 0.0
  %v1328 = vadd.f32 %v1325, %v1327
  %vm1329 = vcmp.eq.s32.totalorder %v1316, 4
  %v1330 = vsel %vm1329, %v1268, 0.0
  %v1331 = vadd.f32 %v1328, %v1330
  %vm1332 = vcmp.eq.s32.totalorder %v1316, 5
  %v1333 = vsel %vm1332, %v1270, 0.0
  %v1334 = vadd.f32 %v1331, %v1333
  %vm1335 = vcmp.eq.s32.totalorder %v1316, 6
  %v1336 = vsel %vm1335, %v1309, 0.0
  %v1337 = vadd.f32 %v1334, %v1336
  %vm1338 = vcmp.eq.s32.totalorder %v1316, 7
  %v1339 = vsel %vm1338, %v1311, 0.0
  %v1340 = vadd.f32 %v1337, %v1339
  %1341 = vst [vmem:[%s11] sm:$0xff] %v1340
  // Predicated region
  $region46: #{forward_pallas.1} parent=0 // pred_check
    _
  $region47: #{forward_pallas.1} parent=0 // pred_check_branch
    %1343 = sbr.rel (0) target = $region49
  $region48: #{forward_pallas.1} parent=0 // pred_region
    _
  $region49: #{forward_pallas.1} parent=0 // pred_fallthru
    _
  // Predicated region
  $region50: #{forward_pallas.1} parent=0 // pred_check
    _
  $region51: #{forward_pallas.1} parent=0 // pred_check_branch
    %1345 = sbr.rel (0) target = $region53
  $region52: #{forward_pallas.1} parent=0 // pred_region
    _
  $region53: #{forward_pallas.1} parent=0 // pred_fallthru
    _

</llo_original>
